<compile_context>
chip_gen: v7x
topology: tpu7x:2x2x1
jax: 0.10.0
libtpu: 0.0.40
codegen_flags: <defaults>
</compile_context>

<pallas_src>
import functools

import jax
import jax.numpy as jnp
from jax.experimental import pallas as pl
from jax.experimental.pallas import tpu as pltpu

LANE = 128  # one 128-lane tile; every hidden width is padded to this


def _round_up(x, m):
    return ((x + m - 1) // m) * m


def _default_num_tensorcores():
    """Best-effort TensorCore count (v7x-class chips have 2); safe fallback 1."""
    try:
        d = jax.devices()[0]
        n = getattr(d, "num_cores", None)
        if isinstance(n, int) and n > 0:
            return n
    except Exception:
        pass
    return 1


# ---------------------------------------------------------------------------
# Pallas kernel: fused Encoder_z0_ODE_RNN forward (len(time_steps) == 1 path)
#
# Layout convention:
#   rows_in (TB, 256): lanes [0:128) = init_data (padded), lanes [128:256) =
#     "x slab" with observed values at [L, L+half) and the has-observation
#     flag at lane 127; everything else zero.
#   "paired" activations are (TB, 256): mean/state half in lanes [0:128),
#     std half in lanes [128:256); real data in the first L lanes of each half.
#   output (TB, 128): mean at lanes [0:z0_dim), raw std at [z0_dim:2*z0_dim).
# ---------------------------------------------------------------------------
def _encoder_kernel(rows_ref, w256_ref, w128_ref, b256_ref, b128_ref, out_ref,
                    *, latent_dim):
    f32 = jnp.float32
    bf16 = jnp.bfloat16
    relu = lambda v: jnp.maximum(v, 0.0)

    def mm(a, w):  # bf16 x bf16 operands, f32 MXU accumulation
        return jnp.dot(a.astype(bf16), w, preferred_element_type=f32)

    rows = rows_ref[...]                     # (TB, 256) f32
    init = rows[:, :LANE]                    # init_data, zero padded
    x_slab = rows[:, LANE:]                  # x at [L:L+half), flag at lane 127

    # static, tile-aligned views into the packed bf16 weight slabs
    whi = w256_ref[0:128, :]
    wur1_m = w256_ref[128:256, :]
    wur1_s = w256_ref[256:384, :]
    wn2 = w256_ref[384:512, :]
    wu2 = w128_ref[0:128, :]
    wr2 = w128_ref[128:256, :]
    wn1_m = w128_ref[256:384, :]
    wn1_s = w128_ref[384:512, :]
    wt1_m = w128_ref[512:640, :]
    wt1_s = w128_ref[640:768, :]
    wt2 = w128_ref[768:896, :]
    bhi = b256_ref[0:1, :]
    bur1 = b256_ref[1:2, :]
    bn2 = b256_ref[2:3, :]
    bu2 = b128_ref[0:1, :]
    br2 = b128_ref[1:2, :]
    bn1 = b128_ref[2:3, :]
    bt1 = b128_ref[3:4, :]
    bt2 = b128_ref[4:5, :]

    # ---- hidden_init: Linear -> ReLU, output = [y_mean ‖ y_std] ------------
    temp = relu(mm(init, whi) + bhi)         # (TB, 256)
    y_std = temp[:, LANE:]                   # .abs() is a no-op after ReLU
    # fold x (+ has-obs flag) into the spare lanes of the mean half;
    # their weight rows / wt1 rows are zero so they never leak into outputs
    y_mean = temp[:, :LANE] + x_slab         # (TB, 128)

    # ---- fused update/reset gates -------------------------------------------
    # first layer: partial matmuls over the mean-slab (incl. x) and std-slab
    g_h = relu(mm(y_mean, wur1_m) + mm(y_std, wur1_s) + bur1)     # (TB, 256)
    # second layer: two 128x128 matmuls instead of one block-diagonal 256x256
    update_gate = jax.nn.sigmoid(mm(g_h[:, :LANE], wu2) + bu2)    # (TB, 128)
    reset_gate = jax.nn.sigmoid(mm(g_h[:, LANE:], wr2) + br2)     # (TB, 128)

    # ---- new-state net -------------------------------------------------------
    # x lanes (>= L) must NOT be reset-gated -> lane-masked gate
    lane = jax.lax.broadcasted_iota(jnp.int32, (1, LANE), 1)
    r_eff = jnp.where(lane < latent_dim, reset_gate, 1.0)
    n_h = relu(mm(y_mean * r_eff, wn1_m) + mm(y_std * reset_gate, wn1_s) + bn1)
    n_out = mm(n_h, wn2) + bn2                                    # (TB, 256)
    new_state = n_out[:, :LANE]
    new_state_std = jnp.abs(n_out[:, LANE:])

    new_y = (1.0 - update_gate) * new_state + update_gate * y_mean
    new_y_std = (1.0 - update_gate) * new_state_std + update_gate * y_std

    # masked update: flag (1 iff any observation) precomputed in the wrapper
    has_obs = x_slab[:, LANE - 1:LANE]                            # (TB, 1)
    new_y = jnp.where(has_obs > 0.5, new_y, y_mean)
    new_y_std = jnp.where(has_obs > 0.5, new_y_std, y_std)

    # ---- transform_z0: Linear -> ReLU -> Linear ------------------------------
    t_h = relu(mm(new_y, wt1_m) + mm(new_y_std, wt1_s) + bt1)     # (TB, 128)
    # single lane-dense 128-wide output tile: [mean | raw std | 0-pad]
    out_ref[...] = mm(t_h, wt2) + bt2


# ---------------------------------------------------------------------------
# One-time parameter preparation: pad / fuse / pre-split / pack the weights
# ---------------------------------------------------------------------------
def prepare_padded_params(params, latent_dim, input_dim, input_init,
                          n_gru_units, z0_dim, inbet_dim=100):
    L = latent_dim
    half = input_dim // 2
    assert input_dim % 2 == 0, "input_dim must be even (values + mask)"
    assert L + half <= LANE - 1, "need room for folded x + has-obs flag lane"
    assert max(L, input_init, n_gru_units, inbet_dim, 2 * z0_dim) <= LANE, \
        "this kernel assumes every hidden width fits in one 128-lane tile"
    f32 = jnp.float32
    bf16 = jnp.bfloat16
    z = lambda r, c: jnp.zeros((r, c), f32)

    w_hi, b_hi = params["hi"]   # (input_init, 2L), (1, 2L)
    w_u1, b_u1 = params["u1"]   # (2L+half, n_gru), (1, n_gru)
    w_u2, b_u2 = params["u2"]   # (n_gru, L), (1, L)
    w_r1, b_r1 = params["r1"]
    w_r2, b_r2 = params["r2"]
    w_n1, b_n1 = params["n1"]   # (2L+half, n_gru)
    w_n2, b_n2 = params["n2"]   # (n_gru, 2L)
    w_t1, b_t1 = params["t1"]   # (2L, inbet)
    w_t2, b_t2 = params["t2"]   # (inbet, 2*z0)

    # hidden_init: output lanes [0:128)=mean half, [128:256)=std half
    whi = z(LANE, 2 * LANE)
    whi = whi.at[:input_init, :L].set(w_hi[:, :L])
    whi = whi.at[:input_init, LANE:LANE + L].set(w_hi[:, L:])

    # fused update/reset first layer, split by input slab; x rows folded in
    wur1_m = z(LANE, 2 * LANE)
    wur1_m = wur1_m.at[:L, :n_gru_units].set(w_u1[:L])
    wur1_m = wur1_m.at[L:L + half, :n_gru_units].set(w_u1[2 * L:])
    wur1_m = wur1_m.at[:L, LANE:LANE + n_gru_units].set(w_r1[:L])
    wur1_m = wur1_m.at[L:L + half, LANE:LANE + n_gru_units].set(w_r1[2 * L:])
    wur1_s = z(LANE, 2 * LANE)
    wur1_s = wur1_s.at[:L, :n_gru_units].set(w_u1[L:2 * L])
    wur1_s = wur1_s.at[:L, LANE:LANE + n_gru_units].set(w_r1[L:2 * L])

    # update / reset second layers: two independent 128x128 tiles
    wu2 = z(LANE, LANE).at[:n_gru_units, :L].set(w_u2)
    wr2 = z(LANE, LANE).at[:n_gru_units, :L].set(w_r2)

    # new-state first layer, same slab split (x rows folded, not reset-gated)
    wn1_m = z(LANE, LANE)
    wn1_m = wn1_m.at[:L, :n_gru_units].set(w_n1[:L])
    wn1_m = wn1_m.at[L:L + half, :n_gru_units].set(w_n1[2 * L:])
    wn1_s = z(LANE, LANE).at[:L, :n_gru_units].set(w_n1[L:2 * L])

    # new-state second layer: output [state ‖ std]
    wn2 = z(LANE, 2 * LANE)
    wn2 = wn2.at[:n_gru_units, :L].set(w_n2[:, :L])
    wn2 = wn2.at[:n_gru_units, LANE:LANE + L].set(w_n2[:, L:])

    # transform_z0 first layer, split by [new_y | new_y_std] input slabs
    wt1_m = z(LANE, LANE).at[:L, :inbet_dim].set(w_t1[:L])
    wt1_s = z(LANE, LANE).at[:L, :inbet_dim].set(w_t1[L:])

    # transform_z0 second layer: single 128-lane output tile [mean | std]
    wt2 = z(LANE, LANE)
    wt2 = wt2.at[:inbet_dim, :z0_dim].set(w_t2[:, :z0_dim])
    wt2 = wt2.at[:inbet_dim, z0_dim:2 * z0_dim].set(w_t2[:, z0_dim:])

    # contiguous bf16 weight slabs (MXU operands)
    w256 = jnp.concatenate([whi, wur1_m, wur1_s, wn2], axis=0).astype(bf16)
    w128 = jnp.concatenate([wu2, wr2, wn1_m, wn1_s, wt1_m, wt1_s, wt2],
                           axis=0).astype(bf16)

    # bias slabs stay f32 (added after f32 MXU accumulation)
    b256 = z(8, 2 * LANE)
    b256 = b256.at[0, :L].set(b_hi[0, :L])
    b256 = b256.at[0, LANE:LANE + L].set(b_hi[0, L:])
    b256 = b256.at[1, :n_gru_units].set(b_u1[0])
    b256 = b256.at[1, LANE:LANE + n_gru_units].set(b_r1[0])
    b256 = b256.at[2, :L].set(b_n2[0, :L])
    b256 = b256.at[2, LANE:LANE + L].set(b_n2[0, L:])

    b128 = z(8, LANE)
    b128 = b128.at[0, :L].set(b_u2[0])
    b128 = b128.at[1, :L].set(b_r2[0])
    b128 = b128.at[2, :n_gru_units].set(b_n1[0])
    b128 = b128.at[3, :inbet_dim].set(b_t1[0])
    b128 = b128.at[4, :z0_dim].set(b_t2[0, :z0_dim])
    b128 = b128.at[4, z0_dim:2 * z0_dim].set(b_t2[0, z0_dim:])

    return dict(w256=w256, w128=w128, b256=b256, b128=b128)


# ---------------------------------------------------------------------------
# Wrapper
# ---------------------------------------------------------------------------
def encoder_z0_ode_rnn_forward(data, time_steps, init_data, padded_params,
                               latent_dim, input_dim, z0_dim,
                               max_batch_tile=512, num_tensorcores=None):
    """Matches Encoder_z0_ODE_RNN.forward for len(time_steps) == 1.

    data:       (n_traj, n_tp, input_dim) float32
    time_steps: (1,)                       float32
    init_data:  (n_traj, input_init)       float32
    returns (mean_z0, std_z0), each (1, n_traj, z0_dim)
    """
    assert time_steps.shape[0] == 1, "Pallas kernel implements the single-step path"
    assert input_dim % 2 == 0
    assert max_batch_tile >= 8
    n_traj = data.shape[0]
    half = input_dim // 2
    L = latent_dim

    xi = data[:, 0, :].astype(jnp.float32)
    x = xi[:, :half]
    mask = xi[:, half:]
    # has-observation flag computed once in JAX (removes mask DMA + XLU reduce)
    has_obs = (jnp.sum(mask, axis=-1, keepdims=True) > 0.0).astype(jnp.float32)

    if num_tensorcores is None:
        num_tensorcores = _default_num_tensorcores()

    # balanced, sublane-aligned batch tiles (no 2x padding blow-up)
    b8 = _round_up(max(n_traj, 8), 8)
    n_tiles = pl.cdiv(b8, max_batch_tile)
    if num_tensorcores > 1 and b8 >= 8 * num_tensorcores:
        n_tiles = max(n_tiles, num_tensorcores)   # span both TCs on v7x-class chips
    tb = _round_up(pl.cdiv(b8, n_tiles), 8)
    n_tiles = pl.cdiv(b8, tb)
    b_pad = tb * n_tiles

    # one (b_pad, 256) row slab: [ init_data | x folded at [L,L+half), flag@255 ]
    rows = jnp.zeros((b_pad, 2 * LANE), jnp.float32)
    rows = rows.at[:n_traj, :init_data.shape[1]].set(init_data.astype(jnp.float32))
    rows = rows.at[:n_traj, LANE + L:LANE + L + half].set(x)
    rows = rows.at[:n_traj, 2 * LANE - 1:].set(has_obs)

    p = padded_params
    row_spec = pl.BlockSpec((tb, 2 * LANE), lambda i: (i, 0))
    const_spec = lambda a: pl.BlockSpec(a.shape, lambda i: (0, 0))

    out = pl.pallas_call(
        functools.partial(_encoder_kernel, latent_dim=latent_dim),
        out_shape=jax.ShapeDtypeStruct((b_pad, LANE), jnp.float32),
        grid_spec=pltpu.PrefetchScalarGridSpec(
            num_scalar_prefetch=0,
            grid=(n_tiles,),
            in_specs=[row_spec,
                      const_spec(p["w256"]), const_spec(p["w128"]),
                      const_spec(p["b256"]), const_spec(p["b128"])],
            out_specs=pl.BlockSpec((tb, LANE), lambda i: (i, 0)),
        ),
        compiler_params=pltpu.CompilerParams(
            dimension_semantics=("parallel",)),
    )(rows, p["w256"], p["w128"], p["b256"], p["b128"])

    # split the lane-dense output tile + abs on the std half (fused by XLA)
    mean_z0 = out[:n_traj, :z0_dim].reshape(1, n_traj, z0_dim)
    std_z0 = jnp.abs(out[:n_traj, z0_dim:2 * z0_dim]).reshape(1, n_traj, z0_dim)
    return mean_z0, std_z0


# ---------------------------------------------------------------------------
# Deterministic parameter initialization (shapes from the module's __init__)
# ---------------------------------------------------------------------------
def init_params(key, latent_dim, input_dim, input_init, n_gru_units, z0_dim,
                inbet_dim=100):
    def linear(k, fan_in, fan_out):
        k1, k2 = jax.random.split(k)
        bound = 1.0 / jnp.sqrt(jnp.float32(fan_in))
        w = jax.random.uniform(k1, (fan_in, fan_out), jnp.float32, -bound, bound)
        b = jax.random.uniform(k2, (1, fan_out), jnp.float32, -bound, bound)
        return w, b

    keys = jax.random.split(key, 9)
    gin = 2 * latent_dim + input_dim // 2
    return {
        "hi": linear(keys[0], input_init, 2 * latent_dim),
        "u1": linear(keys[1], gin, n_gru_units),
        "u2": linear(keys[2], n_gru_units, latent_dim),
        "r1": linear(keys[3], gin, n_gru_units),
        "r2": linear(keys[4], n_gru_units, latent_dim),
        "n1": linear(keys[5], gin, n_gru_units),
        "n2": linear(keys[6], n_gru_units, 2 * latent_dim),
        "t1": linear(keys[7], 2 * latent_dim, inbet_dim),
        "t2": linear(keys[8], inbet_dim, 2 * z0_dim),
    }


# ---------------------------------------------------------------------------
# Pure-JAX f32 reference (mirrors the PyTorch forward) for verification
# ---------------------------------------------------------------------------
def reference_forward(data, init_data, params, latent_dim, input_dim, z0_dim):
    relu = lambda v: jnp.maximum(v, 0.0)
    lin = lambda v, p: v @ p[0] + p[1]

    temp = relu(lin(init_data, params["hi"]))
    y_mean = temp[:, :latent_dim]
    y_std = jnp.abs(temp[:, latent_dim:])

    xi = data[:, 0, :]
    half = input_dim // 2
    x, mask = xi[:, :half], xi[:, half:]

    y_concat = jnp.concatenate([y_mean, y_std, x], axis=-1)
    u = jax.nn.sigmoid(lin(relu(lin(y_concat, params["u1"])), params["u2"]))
    r = jax.nn.sigmoid(lin(relu(lin(y_concat, params["r1"])), params["r2"]))
    concat = jnp.concatenate([y_mean * r, y_std * r, x], axis=-1)
    n_out = lin(relu(lin(concat, params["n1"])), params["n2"])
    new_state, new_state_std = n_out[:, :latent_dim], jnp.abs(n_out[:, latent_dim:])
    new_y = (1 - u) * new_state + u * y_mean
    new_y_std = (1 - u) * new_state_std + u * y_std
    m = (jnp.sum(mask, -1, keepdims=True) > 0).astype(jnp.float32)
    new_y = m * new_y + (1 - m) * y_mean
    new_y_std = m * new_y_std + (1 - m) * y_std

    cat = jnp.concatenate([new_y, new_y_std], axis=-1)
    t_out = lin(relu(lin(cat, params["t1"])), params["t2"])
    mean_z0 = t_out[:, :z0_dim].reshape(1, -1, z0_dim)
    std_z0 = jnp.abs(t_out[:, z0_dim:]).reshape(1, -1, z0_dim)
    return mean_z0, std_z0


# ---------------------------------------------------------------------------
if __name__ == "__main__":
    latent_dim = 16
    input_dim = 8          # n_dims (first half values, second half mask)
    input_init = 7         # module default
    n_gru_units = 100      # module default
    inbet_dim = 100        # module default
    z0_dim = latent_dim
    n_traj = 8
    n_tp = 1               # single time step -> non-ODE path

    key = jax.random.PRNGKey(0)
    k_par, k_x, k_m, k_init = jax.random.split(key, 4)

    params = init_params(k_par, latent_dim, input_dim, input_init,
                         n_gru_units, z0_dim, inbet_dim)
    padded_params = prepare_padded_params(params, latent_dim, input_dim,
                                          input_init, n_gru_units, z0_dim,
                                          inbet_dim)

    # data: values zeroed where mask == 0 (satisfies the GRU_unit assertion)
    half = input_dim // 2
    x_vals = jax.random.normal(k_x, (n_traj, n_tp, half), jnp.float32)
    mask = (jax.random.uniform(k_m, (n_traj, n_tp, half)) > 0.3).astype(jnp.float32)
    data = jnp.concatenate([x_vals * mask, mask], axis=-1)          # (8, 1, 8)
    time_steps = jnp.array([0.0], dtype=jnp.float32)                # (1,)
    init_data = jax.random.normal(k_init, (n_traj, input_init), jnp.float32)

    mean_z0, std_z0 = encoder_z0_ode_rnn_forward(
        data, time_steps, init_data, padded_params,
        latent_dim, input_dim, z0_dim)
    jax.block_until_ready((mean_z0, std_z0))

    ref_mean, ref_std = reference_forward(
        data, init_data, params, latent_dim, input_dim, z0_dim)

    assert mean_z0.shape == (1, n_traj, z0_dim)
    assert std_z0.shape == (1, n_traj, z0_dim)
    # bf16 MXU operands with f32 accumulation -> relaxed tolerance vs f32 ref
    assert jnp.allclose(mean_z0, ref_mean, atol=5e-2, rtol=5e-2)
    assert jnp.allclose(std_z0, ref_std, atol=5e-2, rtol=5e-2)
    assert bool(jnp.all(std_z0 >= 0))

    print("KERNEL_OK")
</pallas_src>

<mosaic_0001>
module attributes {stable_mosaic.version = 11 : i64} {
  func.func @_encoder_kernel(%arg0: i32, %arg1: memref<8x256xf32, #tpu.memory_space<vmem>>, %arg2: memref<512x256xbf16, #tpu.memory_space<vmem>>, %arg3: memref<896x128xbf16, #tpu.memory_space<vmem>>, %arg4: memref<8x256xf32, #tpu.memory_space<vmem>>, %arg5: memref<8x128xf32, #tpu.memory_space<vmem>>, %arg6: memref<8x128xf32, #tpu.memory_space<vmem>>) attributes {dimension_semantics = [#tpu.dimension_semantics<parallel>], iteration_bounds = array<i64: 1>, scalar_prefetch = 0 : i64, scratch_operands = 0 : i64, tpu.core_type = #tpu.core_type<tc>, window_params = [{transform_indices = @transform_0, window_bounds = array<i64: 8, 256>}, {pipeline_mode = #tpu.pipeline_mode<synchronous>, transform_indices = @transform_1, window_bounds = array<i64: 512, 256>}, {pipeline_mode = #tpu.pipeline_mode<synchronous>, transform_indices = @transform_2, window_bounds = array<i64: 896, 128>}, {pipeline_mode = #tpu.pipeline_mode<synchronous>, transform_indices = @transform_3, window_bounds = array<i64: 8, 256>}, {pipeline_mode = #tpu.pipeline_mode<synchronous>, transform_indices = @transform_4, window_bounds = array<i64: 8, 128>}, {transform_indices = @transform_5, window_bounds = array<i64: 8, 128>}]} {
    %c0 = arith.constant 0 : index
    %c0_0 = arith.constant 0 : index
    %0 = vector.load %arg1[%c0, %c0_0] : memref<8x256xf32, #tpu.memory_space<vmem>>, vector<8x256xf32>
    %1 = vector.extract_strided_slice %0 {offsets = [0, 0], sizes = [8, 128], strides = [1, 1]} : vector<8x256xf32> to vector<8x128xf32>
    %2 = vector.extract_strided_slice %0 {offsets = [0, 128], sizes = [8, 128], strides = [1, 1]} : vector<8x256xf32> to vector<8x128xf32>
    %c0_1 = arith.constant 0 : index
    %c0_2 = arith.constant 0 : index
    %3 = vector.load %arg2[%c0_1, %c0_2] : memref<512x256xbf16, #tpu.memory_space<vmem>>, vector<128x256xbf16>
    %c128 = arith.constant 128 : index
    %c0_3 = arith.constant 0 : index
    %4 = vector.load %arg2[%c128, %c0_3] : memref<512x256xbf16, #tpu.memory_space<vmem>>, vector<128x256xbf16>
    %c256 = arith.constant 256 : index
    %c0_4 = arith.constant 0 : index
    %5 = vector.load %arg2[%c256, %c0_4] : memref<512x256xbf16, #tpu.memory_space<vmem>>, vector<128x256xbf16>
    %c384 = arith.constant 384 : index
    %c0_5 = arith.constant 0 : index
    %6 = vector.load %arg2[%c384, %c0_5] : memref<512x256xbf16, #tpu.memory_space<vmem>>, vector<128x256xbf16>
    %c0_6 = arith.constant 0 : index
    %c0_7 = arith.constant 0 : index
    %7 = vector.load %arg3[%c0_6, %c0_7] : memref<896x128xbf16, #tpu.memory_space<vmem>>, vector<128x128xbf16>
    %c128_8 = arith.constant 128 : index
    %c0_9 = arith.constant 0 : index
    %8 = vector.load %arg3[%c128_8, %c0_9] : memref<896x128xbf16, #tpu.memory_space<vmem>>, vector<128x128xbf16>
    %c256_10 = arith.constant 256 : index
    %c0_11 = arith.constant 0 : index
    %9 = vector.load %arg3[%c256_10, %c0_11] : memref<896x128xbf16, #tpu.memory_space<vmem>>, vector<128x128xbf16>
    %c384_12 = arith.constant 384 : index
    %c0_13 = arith.constant 0 : index
    %10 = vector.load %arg3[%c384_12, %c0_13] : memref<896x128xbf16, #tpu.memory_space<vmem>>, vector<128x128xbf16>
    %c512 = arith.constant 512 : index
    %c0_14 = arith.constant 0 : index
    %11 = vector.load %arg3[%c512, %c0_14] : memref<896x128xbf16, #tpu.memory_space<vmem>>, vector<128x128xbf16>
    %c640 = arith.constant 640 : index
    %c0_15 = arith.constant 0 : index
    %12 = vector.load %arg3[%c640, %c0_15] : memref<896x128xbf16, #tpu.memory_space<vmem>>, vector<128x128xbf16>
    %c768 = arith.constant 768 : index
    %c0_16 = arith.constant 0 : index
    %13 = vector.load %arg3[%c768, %c0_16] : memref<896x128xbf16, #tpu.memory_space<vmem>>, vector<128x128xbf16>
    %c0_17 = arith.constant 0 : index
    %c0_18 = arith.constant 0 : index
    %14 = vector.load %arg4[%c0_17, %c0_18] : memref<8x256xf32, #tpu.memory_space<vmem>>, vector<1x256xf32>
    %c1 = arith.constant 1 : index
    %c0_19 = arith.constant 0 : index
    %15 = vector.load %arg4[%c1, %c0_19] : memref<8x256xf32, #tpu.memory_space<vmem>>, vector<1x256xf32>
    %c2 = arith.constant 2 : index
    %c0_20 = arith.constant 0 : index
    %16 = vector.load %arg4[%c2, %c0_20] : memref<8x256xf32, #tpu.memory_space<vmem>>, vector<1x256xf32>
    %c0_21 = arith.constant 0 : index
    %c0_22 = arith.constant 0 : index
    %17 = vector.load %arg5[%c0_21, %c0_22] : memref<8x128xf32, #tpu.memory_space<vmem>>, vector<1x128xf32>
    %c1_23 = arith.constant 1 : index
    %c0_24 = arith.constant 0 : index
    %18 = vector.load %arg5[%c1_23, %c0_24] : memref<8x128xf32, #tpu.memory_space<vmem>>, vector<1x128xf32>
    %c2_25 = arith.constant 2 : index
    %c0_26 = arith.constant 0 : index
    %19 = vector.load %arg5[%c2_25, %c0_26] : memref<8x128xf32, #tpu.memory_space<vmem>>, vector<1x128xf32>
    %c3 = arith.constant 3 : index
    %c0_27 = arith.constant 0 : index
    %20 = vector.load %arg5[%c3, %c0_27] : memref<8x128xf32, #tpu.memory_space<vmem>>, vector<1x128xf32>
    %c4 = arith.constant 4 : index
    %c0_28 = arith.constant 0 : index
    %21 = vector.load %arg5[%c4, %c0_28] : memref<8x128xf32, #tpu.memory_space<vmem>>, vector<1x128xf32>
    %22 = arith.truncf %1 : vector<8x128xf32> to vector<8x128xbf16>
    %cst = arith.constant dense<0.000000e+00> : vector<8x256xf32>
    %23 = tpu.matmul %22, %3, %cst {dimension_numbers = #tpu.dot_dimension_numbers<[1], [0], [0], [1], [0, 0, 1, 1], [], []>} : vector<8x128xbf16>, vector<128x256xbf16>, vector<8x256xf32> -> vector<8x256xf32>
    %24 = vector.broadcast %14 : vector<1x256xf32> to vector<8x256xf32>
    %25 = arith.addf %23, %24 : vector<8x256xf32>
    %cst_29 = arith.constant 0.000000e+00 : f32
    %26 = vector.broadcast %cst_29 : f32 to vector<8x256xf32>
    %27 = arith.maximumf %25, %26 : vector<8x256xf32>
    %28 = vector.extract_strided_slice %27 {offsets = [0, 128], sizes = [8, 128], strides = [1, 1]} : vector<8x256xf32> to vector<8x128xf32>
    %29 = vector.extract_strided_slice %27 {offsets = [0, 0], sizes = [8, 128], strides = [1, 1]} : vector<8x256xf32> to vector<8x128xf32>
    %30 = arith.addf %29, %2 : vector<8x128xf32>
    %31 = arith.truncf %30 : vector<8x128xf32> to vector<8x128xbf16>
    %cst_30 = arith.constant dense<0.000000e+00> : vector<8x256xf32>
    %32 = tpu.matmul %31, %4, %cst_30 {dimension_numbers = #tpu.dot_dimension_numbers<[1], [0], [0], [1], [0, 0, 1, 1], [], []>} : vector<8x128xbf16>, vector<128x256xbf16>, vector<8x256xf32> -> vector<8x256xf32>
    %33 = arith.truncf %28 : vector<8x128xf32> to vector<8x128xbf16>
    %cst_31 = arith.constant dense<0.000000e+00> : vector<8x256xf32>
    %34 = tpu.matmul %33, %5, %cst_31 {dimension_numbers = #tpu.dot_dimension_numbers<[1], [0], [0], [1], [0, 0, 1, 1], [], []>} : vector<8x128xbf16>, vector<128x256xbf16>, vector<8x256xf32> -> vector<8x256xf32>
    %35 = arith.addf %32, %34 : vector<8x256xf32>
    %36 = vector.broadcast %15 : vector<1x256xf32> to vector<8x256xf32>
    %37 = arith.addf %35, %36 : vector<8x256xf32>
    %cst_32 = arith.constant 0.000000e+00 : f32
    %38 = vector.broadcast %cst_32 : f32 to vector<8x256xf32>
    %39 = arith.maximumf %37, %38 : vector<8x256xf32>
    %40 = vector.extract_strided_slice %39 {offsets = [0, 0], sizes = [8, 128], strides = [1, 1]} : vector<8x256xf32> to vector<8x128xf32>
    %41 = arith.truncf %40 : vector<8x128xf32> to vector<8x128xbf16>
    %cst_33 = arith.constant dense<0.000000e+00> : vector<8x128xf32>
    %42 = tpu.matmul %41, %7, %cst_33 {dimension_numbers = #tpu.dot_dimension_numbers<[1], [0], [0], [1], [0, 0, 1, 1], [], []>} : vector<8x128xbf16>, vector<128x128xbf16>, vector<8x128xf32> -> vector<8x128xf32>
    %43 = vector.broadcast %17 : vector<1x128xf32> to vector<8x128xf32>
    %44 = arith.addf %42, %43 : vector<8x128xf32>
    %45 = arith.negf %44 : vector<8x128xf32>
    %46 = math.exp %45 : vector<8x128xf32>
    %cst_34 = arith.constant 1.000000e+00 : f32
    %47 = vector.broadcast %cst_34 : f32 to vector<8x128xf32>
    %48 = arith.addf %47, %46 : vector<8x128xf32>
    %49 = arith.divf %47, %48 : vector<8x128xf32>
    %50 = vector.extract_strided_slice %39 {offsets = [0, 128], sizes = [8, 128], strides = [1, 1]} : vector<8x256xf32> to vector<8x128xf32>
    %51 = arith.truncf %50 : vector<8x128xf32> to vector<8x128xbf16>
    %cst_35 = arith.constant dense<0.000000e+00> : vector<8x128xf32>
    %52 = tpu.matmul %51, %8, %cst_35 {dimension_numbers = #tpu.dot_dimension_numbers<[1], [0], [0], [1], [0, 0, 1, 1], [], []>} : vector<8x128xbf16>, vector<128x128xbf16>, vector<8x128xf32> -> vector<8x128xf32>
    %53 = vector.broadcast %18 : vector<1x128xf32> to vector<8x128xf32>
    %54 = arith.addf %52, %53 : vector<8x128xf32>
    %55 = arith.negf %54 : vector<8x128xf32>
    %56 = math.exp %55 : vector<8x128xf32>
    %cst_36 = arith.constant 1.000000e+00 : f32
    %57 = vector.broadcast %cst_36 : f32 to vector<8x128xf32>
    %58 = arith.addf %57, %56 : vector<8x128xf32>
    %59 = arith.divf %57, %58 : vector<8x128xf32>
    %60 = tpu.iota {dimensions = array<i32: 1>} : vector<1x128xi32>
    %c16_i32 = arith.constant 16 : i32
    %61 = vector.broadcast %c16_i32 : i32 to vector<1x128xi32>
    %62 = arith.cmpi slt, %60, %61 : vector<1x128xi32>
    %cst_37 = arith.constant 1.000000e+00 : f32
    %63 = vector.shape_cast %62 : vector<1x128xi1> to vector<1x128xi1>
    %64 = vector.broadcast %63 : vector<1x128xi1> to vector<8x128xi1>
    %65 = vector.broadcast %cst_37 : f32 to vector<8x128xf32>
    %66 = arith.select %64, %59, %65 : vector<8x128xi1>, vector<8x128xf32>
    %67 = arith.mulf %30, %66 : vector<8x128xf32>
    %68 = arith.truncf %67 : vector<8x128xf32> to vector<8x128xbf16>
    %cst_38 = arith.constant dense<0.000000e+00> : vector<8x128xf32>
    %69 = tpu.matmul %68, %9, %cst_38 {dimension_numbers = #tpu.dot_dimension_numbers<[1], [0], [0], [1], [0, 0, 1, 1], [], []>} : vector<8x128xbf16>, vector<128x128xbf16>, vector<8x128xf32> -> vector<8x128xf32>
    %70 = arith.mulf %28, %59 : vector<8x128xf32>
    %71 = arith.truncf %70 : vector<8x128xf32> to vector<8x128xbf16>
    %cst_39 = arith.constant dense<0.000000e+00> : vector<8x128xf32>
    %72 = tpu.matmul %71, %10, %cst_39 {dimension_numbers = #tpu.dot_dimension_numbers<[1], [0], [0], [1], [0, 0, 1, 1], [], []>} : vector<8x128xbf16>, vector<128x128xbf16>, vector<8x128xf32> -> vector<8x128xf32>
    %73 = arith.addf %69, %72 : vector<8x128xf32>
    %74 = vector.broadcast %19 : vector<1x128xf32> to vector<8x128xf32>
    %75 = arith.addf %73, %74 : vector<8x128xf32>
    %cst_40 = arith.constant 0.000000e+00 : f32
    %76 = vector.broadcast %cst_40 : f32 to vector<8x128xf32>
    %77 = arith.maximumf %75, %76 : vector<8x128xf32>
    %78 = arith.truncf %77 : vector<8x128xf32> to vector<8x128xbf16>
    %cst_41 = arith.constant dense<0.000000e+00> : vector<8x256xf32>
    %79 = tpu.matmul %78, %6, %cst_41 {dimension_numbers = #tpu.dot_dimension_numbers<[1], [0], [0], [1], [0, 0, 1, 1], [], []>} : vector<8x128xbf16>, vector<128x256xbf16>, vector<8x256xf32> -> vector<8x256xf32>
    %80 = vector.broadcast %16 : vector<1x256xf32> to vector<8x256xf32>
    %81 = arith.addf %79, %80 : vector<8x256xf32>
    %82 = vector.extract_strided_slice %81 {offsets = [0, 0], sizes = [8, 128], strides = [1, 1]} : vector<8x256xf32> to vector<8x128xf32>
    %83 = vector.extract_strided_slice %81 {offsets = [0, 128], sizes = [8, 128], strides = [1, 1]} : vector<8x256xf32> to vector<8x128xf32>
    %84 = math.absf %83 : vector<8x128xf32>
    %cst_42 = arith.constant 1.000000e+00 : f32
    %85 = vector.broadcast %cst_42 : f32 to vector<8x128xf32>
    %86 = arith.subf %85, %49 : vector<8x128xf32>
    %87 = arith.mulf %86, %82 : vector<8x128xf32>
    %88 = arith.mulf %49, %30 : vector<8x128xf32>
    %89 = arith.addf %87, %88 : vector<8x128xf32>
    %cst_43 = arith.constant 1.000000e+00 : f32
    %90 = vector.broadcast %cst_43 : f32 to vector<8x128xf32>
    %91 = arith.subf %90, %49 : vector<8x128xf32>
    %92 = arith.mulf %91, %84 : vector<8x128xf32>
    %93 = arith.mulf %49, %28 : vector<8x128xf32>
    %94 = arith.addf %92, %93 : vector<8x128xf32>
    %95 = vector.extract_strided_slice %2 {offsets = [0, 127], sizes = [8, 1], strides = [1, 1]} : vector<8x128xf32> to vector<8x1xf32>
    %cst_44 = arith.constant 5.000000e-01 : f32
    %96 = vector.broadcast %cst_44 : f32 to vector<8x1xf32>
    %97 = arith.cmpf ogt, %95, %96 : vector<8x1xf32>
    %98 = vector.shape_cast %97 : vector<8x1xi1> to vector<8x1xi1>
    %99 = vector.broadcast %98 : vector<8x1xi1> to vector<8x128xi1>
    %100 = arith.select %99, %89, %30 : vector<8x128xi1>, vector<8x128xf32>
    %cst_45 = arith.constant 5.000000e-01 : f32
    %101 = vector.broadcast %cst_45 : f32 to vector<8x1xf32>
    %102 = arith.cmpf ogt, %95, %101 : vector<8x1xf32>
    %103 = vector.shape_cast %102 : vector<8x1xi1> to vector<8x1xi1>
    %104 = vector.broadcast %103 : vector<8x1xi1> to vector<8x128xi1>
    %105 = arith.select %104, %94, %28 : vector<8x128xi1>, vector<8x128xf32>
    %106 = arith.truncf %100 : vector<8x128xf32> to vector<8x128xbf16>
    %cst_46 = arith.constant dense<0.000000e+00> : vector<8x128xf32>
    %107 = tpu.matmul %106, %11, %cst_46 {dimension_numbers = #tpu.dot_dimension_numbers<[1], [0], [0], [1], [0, 0, 1, 1], [], []>} : vector<8x128xbf16>, vector<128x128xbf16>, vector<8x128xf32> -> vector<8x128xf32>
    %108 = arith.truncf %105 : vector<8x128xf32> to vector<8x128xbf16>
    %cst_47 = arith.constant dense<0.000000e+00> : vector<8x128xf32>
    %109 = tpu.matmul %108, %12, %cst_47 {dimension_numbers = #tpu.dot_dimension_numbers<[1], [0], [0], [1], [0, 0, 1, 1], [], []>} : vector<8x128xbf16>, vector<128x128xbf16>, vector<8x128xf32> -> vector<8x128xf32>
    %110 = arith.addf %107, %109 : vector<8x128xf32>
    %111 = vector.broadcast %20 : vector<1x128xf32> to vector<8x128xf32>
    %112 = arith.addf %110, %111 : vector<8x128xf32>
    %cst_48 = arith.constant 0.000000e+00 : f32
    %113 = vector.broadcast %cst_48 : f32 to vector<8x128xf32>
    %114 = arith.maximumf %112, %113 : vector<8x128xf32>
    %115 = arith.truncf %114 : vector<8x128xf32> to vector<8x128xbf16>
    %cst_49 = arith.constant dense<0.000000e+00> : vector<8x128xf32>
    %116 = tpu.matmul %115, %13, %cst_49 {dimension_numbers = #tpu.dot_dimension_numbers<[1], [0], [0], [1], [0, 0, 1, 1], [], []>} : vector<8x128xbf16>, vector<128x128xbf16>, vector<8x128xf32> -> vector<8x128xf32>
    %117 = vector.broadcast %21 : vector<1x128xf32> to vector<8x128xf32>
    %118 = arith.addf %116, %117 : vector<8x128xf32>
    %c0_50 = arith.constant 0 : index
    %c0_51 = arith.constant 0 : index
    %119 = vector.load %arg6[%c0_50, %c0_51] : memref<8x128xf32, #tpu.memory_space<vmem>>, vector<8x128xf32>
    tpu.vector_store %arg6[%c0_50, %c0_51], %118 {strides = array<i32>} : memref<8x128xf32, #tpu.memory_space<vmem>>, vector<8x128xf32>,
    return
  }
  func.func @transform_0(%arg0: i32) -> (i32, i32) {
    %c0_i32 = arith.constant 0 : i32
    %c0_i32_0 = arith.constant 0 : i32
    return %arg0, %c0_i32 : i32, i32
  }
  func.func @transform_1(%arg0: i32) -> (i32, i32) {
    %c0_i32 = arith.constant 0 : i32
    %c0_i32_0 = arith.constant 0 : i32
    %c0_i32_1 = arith.constant 0 : i32
    return %c0_i32, %c0_i32_0 : i32, i32
  }
  func.func @transform_2(%arg0: i32) -> (i32, i32) {
    %c0_i32 = arith.constant 0 : i32
    %c0_i32_0 = arith.constant 0 : i32
    %c0_i32_1 = arith.constant 0 : i32
    return %c0_i32, %c0_i32_0 : i32, i32
  }
  func.func @transform_3(%arg0: i32) -> (i32, i32) {
    %c0_i32 = arith.constant 0 : i32
    %c0_i32_0 = arith.constant 0 : i32
    %c0_i32_1 = arith.constant 0 : i32
    return %c0_i32, %c0_i32_0 : i32, i32
  }
  func.func @transform_4(%arg0: i32) -> (i32, i32) {
    %c0_i32 = arith.constant 0 : i32
    %c0_i32_0 = arith.constant 0 : i32
    %c0_i32_1 = arith.constant 0 : i32
    return %c0_i32, %c0_i32_0 : i32, i32
  }
  func.func @transform_5(%arg0: i32) -> (i32, i32) {
    %c0_i32 = arith.constant 0 : i32
    %c0_i32_0 = arith.constant 0 : i32
    return %arg0, %c0_i32 : i32, i32
  }
}

</mosaic_0001>

<llo_original>
// kernel: tpu_custom_call.1
$region0: #{tpu_custom_call.1}
  #allocation0 [shape = 'u32[]', space=smem, size = 0x4, offset = 0x4, fixed_abs, tag = 'smem constant byte address 0x4 - core index']
  #allocation1 [shape = 'u32[144,128]{1,0:T(1,128)}', space=vmem, size = 0x12000, scoped, tag = 'internal scratch']
  %s0 = inlined_call_operand.hbm [shape: f32[8,256], index: 0, kind: input, shape index: {}]
  %s1 = inlined_call_operand.hbm [shape: bf16[512,256], index: 1, kind: input, shape index: {}]
  %s2 = inlined_call_operand.hbm [shape: bf16[896,128], index: 2, kind: input, shape index: {}]
  %s3 = inlined_call_operand.hbm [shape: f32[8,256], index: 3, kind: input, shape index: {}]
  %s4 = inlined_call_operand.vmem [shape: f32[8,128], index: 4, kind: input, shape index: {}]
  %s5 = inlined_call_operand.hbm [shape: f32[8,128], index: 5, kind: output, shape index: {}]
  %s6 = sld [smem:[#allocation0]]
  $region46: #{tpu_custom_call.1} parent=0
    _
  %s8 = ssub.s32 1, %s6
  %s9 = scalar_select 0, %s8, %s6
  $region1: #{tpu_custom_call.1} parent=0
    #allocation2 [shape = 'u8[8192]{0}', space=vmem, size = 0x2000, scoped, tag = 'input window, operand 0, single buffered']
    #allocation3 [shape = 's32[1]{0}', space=sflag, size = 0x4, scoped, tag = 'scoped memory for tpu_custom_call.1']
    #allocation4 [shape = 's32[1]{0}', space=sflag, size = 0x4, scoped, tag = 'scoped memory for tpu_custom_call.1']
    #allocation5 [shape = 'u8[262144]{0}', space=vmem, size = 0x40000, scoped, tag = 'input window, operand 1, single buffered']
    #allocation6 [shape = 's32[1]{0}', space=sflag, size = 0x4, scoped, tag = 'scoped memory for tpu_custom_call.1']
    #allocation7 [shape = 'u8[229376]{0}', space=vmem, size = 0x38000, scoped, tag = 'input window, operand 2, single buffered']
    #allocation8 [shape = 'u8[8192]{0}', space=vmem, size = 0x2000, scoped, tag = 'input window, operand 3, single buffered']
    #allocation9 [shape = 's32[1]{0}', space=sflag, size = 0x4, scoped, tag = 'scoped memory for tpu_custom_call.1']
    #allocation10 [shape = 'u8[4096]{0}', space=vmem, size = 0x1000, scoped, tag = 'output window, operand 0, single buffered']
    %10 = vsyncpa [#allocation3], 0
    %11 = vsyncpa [#allocation6], 0
    %12 = vsyncpa [#allocation9], 0
    %13 = vsyncpa [#allocation4], 0
    // Predicated region
    $region2: #{tpu_custom_call.1} parent=1 // pred_check
      _
    $region3: #{tpu_custom_call.1} parent=1 // pred_check_branch
      %15 = sbr.rel (0) target = $region5
    $region4: #{tpu_custom_call.1} parent=1 // pred_region
      %s17 = ssub.s32 256, 256
      %18 = vsyncadd [#allocation3], %s17
      %s20 = sshll.u32 [#allocation2], 4
      %s21 = int_to_ptr.vmem [resolvable:$true] %s20
      %23 = dma.hbm_to_vmem [thread:$0]  %s0, 256, %s21, [#allocation3]
    $region5: #{tpu_custom_call.1} parent=1 // pred_fallthru
      _
    // Predicated region
    $region6: #{tpu_custom_call.1} parent=1 // pred_check
      _
    $region7: #{tpu_custom_call.1} parent=1 // pred_check_branch
      %25 = sbr.rel (0) target = $region9
    $region8: #{tpu_custom_call.1} parent=1 // pred_region
      %s27 = ssub.s32 8192, 8192
      %28 = vsyncadd [#allocation6], %s27
      %s29 = sshll.u32 [#allocation5], 4
      %s30 = int_to_ptr.vmem [resolvable:$true] %s29
      %35 = dma.hbm_to_vmem [thread:$0]  %s1, 8192, %s30, [#allocation6], 128, 128, 8
    $region9: #{tpu_custom_call.1} parent=1 // pred_fallthru
      _
    // Predicated region
    $region10: #{tpu_custom_call.1} parent=1 // pred_check
      _
    $region11: #{tpu_custom_call.1} parent=1 // pred_check_branch
      %37 = sbr.rel (0) target = $region13
    $region12: #{tpu_custom_call.1} parent=1 // pred_region
      %s39 = ssub.s32 7168, 7168
      %40 = vsyncadd [#allocation6], %s39
      %s41 = sshll.u32 [#allocation7], 4
      %s42 = int_to_ptr.vmem [resolvable:$true] %s41
      %47 = dma.hbm_to_vmem [thread:$0]  %s2, 7168, %s42, [#allocation6], 64, 64, 4
    $region13: #{tpu_custom_call.1} parent=1 // pred_fallthru
      _
    // Predicated region
    $region14: #{tpu_custom_call.1} parent=1 // pred_check
      _
    $region15: #{tpu_custom_call.1} parent=1 // pred_check_branch
      %49 = sbr.rel (0) target = $region17
    $region16: #{tpu_custom_call.1} parent=1 // pred_region
      %s51 = ssub.s32 256, 256
      %52 = vsyncadd [#allocation9], %s51
      %s54 = sshll.u32 [#allocation8], 4
      %s55 = int_to_ptr.vmem [resolvable:$true] %s54
      %57 = dma.hbm_to_vmem [thread:$0]  %s3, 256, %s55, [#allocation9]
    $region17: #{tpu_custom_call.1} parent=1 // pred_fallthru
      _
    // Predicated region
    $region18: #{tpu_custom_call.1} parent=1 // pred_check
      _
    $region19: #{tpu_custom_call.1} parent=1 // pred_check_branch
      %59 = sbr.rel (0) target = $region21
    $region20: #{tpu_custom_call.1} parent=1 // pred_region
      _
    $region21: #{tpu_custom_call.1} parent=1 // pred_fallthru
      _
    // Predicated region
    $region22: #{tpu_custom_call.1} parent=1 // pred_check
      _
    $region23: #{tpu_custom_call.1} parent=1 // pred_check_branch
      %61 = sbr.rel (0) target = $region25
    $region24: #{tpu_custom_call.1} parent=1 // pred_region
      %62 = dma.done [#allocation3], 256
    $region25: #{tpu_custom_call.1} parent=1 // pred_fallthru
      _
    // Predicated region
    $region26: #{tpu_custom_call.1} parent=1 // pred_check
      _
    $region27: #{tpu_custom_call.1} parent=1 // pred_check_branch
      %64 = sbr.rel (0) target = $region29
    $region28: #{tpu_custom_call.1} parent=1 // pred_region
      %65 = dma.done [#allocation6], 8192
    $region29: #{tpu_custom_call.1} parent=1 // pred_fallthru
      _
    // Predicated region
    $region30: #{tpu_custom_call.1} parent=1 // pred_check
      _
    $region31: #{tpu_custom_call.1} parent=1 // pred_check_branch
      %67 = sbr.rel (0) target = $region33
    $region32: #{tpu_custom_call.1} parent=1 // pred_region
      %68 = dma.done [#allocation6], 7168
    $region33: #{tpu_custom_call.1} parent=1 // pred_fallthru
      _
    // Predicated region
    $region34: #{tpu_custom_call.1} parent=1 // pred_check
      _
    $region35: #{tpu_custom_call.1} parent=1 // pred_check_branch
      %70 = sbr.rel (0) target = $region37
    $region36: #{tpu_custom_call.1} parent=1 // pred_region
      %71 = dma.done [#allocation9], 256
    $region37: #{tpu_custom_call.1} parent=1 // pred_fallthru
      _
    %v73 = vld [vmem:[#allocation2] sm:$0xff]
    %v74 = vld [vmem:[#allocation2 + $0x8] sm:$0xff]
    %v75 = vld [vmem:[#allocation5] sm:$0xff]
    %v76 = vld [vmem:[#allocation5 + $0x8] sm:$0xff]
    %v77 = vld [vmem:[#allocation5 + $0x10] sm:$0xff]
    %v78 = vld [vmem:[#allocation5 + $0x18] sm:$0xff]
    %v79 = vld [vmem:[#allocation5 + $0x20] sm:$0xff]
    %v80 = vld [vmem:[#allocation5 + $0x28] sm:$0xff]
    %v81 = vld [vmem:[#allocation5 + $0x30] sm:$0xff]
    %v82 = vld [vmem:[#allocation5 + $0x38] sm:$0xff]
    %v83 = vld [vmem:[#allocation5 + $0x40] sm:$0xff]
    %v84 = vld [vmem:[#allocation5 + $0x48] sm:$0xff]
    %v85 = vld [vmem:[#allocation5 + $0x50] sm:$0xff]
    %v86 = vld [vmem:[#allocation5 + $0x58] sm:$0xff]
    %v87 = vld [vmem:[#allocation5 + $0x60] sm:$0xff]
    %v88 = vld [vmem:[#allocation5 + $0x68] sm:$0xff]
    %v89 = vld [vmem:[#allocation5 + $0x70] sm:$0xff]
    %v90 = vld [vmem:[#allocation5 + $0x78] sm:$0xff]
    %v91 = vld [vmem:[#allocation5 + $0x80] sm:$0xff]
    %v92 = vld [vmem:[#allocation5 + $0x88] sm:$0xff]
    %v93 = vld [vmem:[#allocation5 + $0x90] sm:$0xff]
    %v94 = vld [vmem:[#allocation5 + $0x98] sm:$0xff]
    %v95 = vld [vmem:[#allocation5 + $0xa0] sm:$0xff]
    %v96 = vld [vmem:[#allocation5 + $0xa8] sm:$0xff]
    %v97 = vld [vmem:[#allocation5 + $0xb0] sm:$0xff]
    %v98 = vld [vmem:[#allocation5 + $0xb8] sm:$0xff]
    %v99 = vld [vmem:[#allocation5 + $0xc0] sm:$0xff]
    %v100 = vld [vmem:[#allocation5 + $0xc8] sm:$0xff]
    %v101 = vld [vmem:[#allocation5 + $0xd0] sm:$0xff]
    %v102 = vld [vmem:[#allocation5 + $0xd8] sm:$0xff]
    %v103 = vld [vmem:[#allocation5 + $0xe0] sm:$0xff]
    %v104 = vld [vmem:[#allocation5 + $0xe8] sm:$0xff]
    %v105 = vld [vmem:[#allocation5 + $0xf0] sm:$0xff]
    %v106 = vld [vmem:[#allocation5 + $0xf8] sm:$0xff]
    %v107 = vld [vmem:[#allocation5 + $0x100] sm:$0xff]
    %v108 = vld [vmem:[#allocation5 + $0x108] sm:$0xff]
    %v109 = vld [vmem:[#allocation5 + $0x110] sm:$0xff]
    %v110 = vld [vmem:[#allocation5 + $0x118] sm:$0xff]
    %v111 = vld [vmem:[#allocation5 + $0x120] sm:$0xff]
    %v112 = vld [vmem:[#allocation5 + $0x128] sm:$0xff]
    %v113 = vld [vmem:[#allocation5 + $0x130] sm:$0xff]
    %v114 = vld [vmem:[#allocation5 + $0x138] sm:$0xff]
    %v115 = vld [vmem:[#allocation5 + $0x140] sm:$0xff]
    %v116 = vld [vmem:[#allocation5 + $0x148] sm:$0xff]
    %v117 = vld [vmem:[#allocation5 + $0x150] sm:$0xff]
    %v118 = vld [vmem:[#allocation5 + $0x158] sm:$0xff]
    %v119 = vld [vmem:[#allocation5 + $0x160] sm:$0xff]
    %v120 = vld [vmem:[#allocation5 + $0x168] sm:$0xff]
    %v121 = vld [vmem:[#allocation5 + $0x170] sm:$0xff]
    %v122 = vld [vmem:[#allocation5 + $0x178] sm:$0xff]
    %v123 = vld [vmem:[#allocation5 + $0x180] sm:$0xff]
    %v124 = vld [vmem:[#allocation5 + $0x188] sm:$0xff]
    %v125 = vld [vmem:[#allocation5 + $0x190] sm:$0xff]
    %v126 = vld [vmem:[#allocation5 + $0x198] sm:$0xff]
    %v127 = vld [vmem:[#allocation5 + $0x1a0] sm:$0xff]
    %v128 = vld [vmem:[#allocation5 + $0x1a8] sm:$0xff]
    %v129 = vld [vmem:[#allocation5 + $0x1b0] sm:$0xff]
    %v130 = vld [vmem:[#allocation5 + $0x1b8] sm:$0xff]
    %v131 = vld [vmem:[#allocation5 + $0x1c0] sm:$0xff]
    %v132 = vld [vmem:[#allocation5 + $0x1c8] sm:$0xff]
    %v133 = vld [vmem:[#allocation5 + $0x1d0] sm:$0xff]
    %v134 = vld [vmem:[#allocation5 + $0x1d8] sm:$0xff]
    %v135 = vld [vmem:[#allocation5 + $0x1e0] sm:$0xff]
    %v136 = vld [vmem:[#allocation5 + $0x1e8] sm:$0xff]
    %v137 = vld [vmem:[#allocation5 + $0x1f0] sm:$0xff]
    %v138 = vld [vmem:[#allocation5 + $0x1f8] sm:$0xff]
    %v139 = vld [vmem:[#allocation7] sm:$0xf]
    %v140 = vld [vmem:[#allocation7 + $0x4] sm:$0xf]
    %v141 = vld [vmem:[#allocation7 + $0x8] sm:$0xf]
    %v142 = vld [vmem:[#allocation7 + $0xc] sm:$0xf]
    %v143 = vld [vmem:[#allocation7 + $0x10] sm:$0xf]
    %v144 = vld [vmem:[#allocation7 + $0x14] sm:$0xf]
    %v145 = vld [vmem:[#allocation7 + $0x18] sm:$0xf]
    %v146 = vld [vmem:[#allocation7 + $0x1c] sm:$0xf]
    %v147 = vld [vmem:[#allocation7 + $0x20] sm:$0xf]
    %v148 = vld [vmem:[#allocation7 + $0x24] sm:$0xf]
    %v149 = vld [vmem:[#allocation7 + $0x28] sm:$0xf]
    %v150 = vld [vmem:[#allocation7 + $0x2c] sm:$0xf]
    %v151 = vld [vmem:[#allocation7 + $0x30] sm:$0xf]
    %v152 = vld [vmem:[#allocation7 + $0x34] sm:$0xf]
    %v153 = vld [vmem:[#allocation7 + $0x38] sm:$0xf]
    %v154 = vld [vmem:[#allocation7 + $0x3c] sm:$0xf]
    %v155 = vld [vmem:[#allocation7 + $0x40] sm:$0xf]
    %v156 = vld [vmem:[#allocation7 + $0x44] sm:$0xf]
    %v157 = vld [vmem:[#allocation7 + $0x48] sm:$0xf]
    %v158 = vld [vmem:[#allocation7 + $0x4c] sm:$0xf]
    %v159 = vld [vmem:[#allocation7 + $0x50] sm:$0xf]
    %v160 = vld [vmem:[#allocation7 + $0x54] sm:$0xf]
    %v161 = vld [vmem:[#allocation7 + $0x58] sm:$0xf]
    %v162 = vld [vmem:[#allocation7 + $0x5c] sm:$0xf]
    %v163 = vld [vmem:[#allocation7 + $0x60] sm:$0xf]
    %v164 = vld [vmem:[#allocation7 + $0x64] sm:$0xf]
    %v165 = vld [vmem:[#allocation7 + $0x68] sm:$0xf]
    %v166 = vld [vmem:[#allocation7 + $0x6c] sm:$0xf]
    %v167 = vld [vmem:[#allocation7 + $0x70] sm:$0xf]
    %v168 = vld [vmem:[#allocation7 + $0x74] sm:$0xf]
    %v169 = vld [vmem:[#allocation7 + $0x78] sm:$0xf]
    %v170 = vld [vmem:[#allocation7 + $0x7c] sm:$0xf]
    %v171 = vld [vmem:[#allocation7 + $0x80] sm:$0xf]
    %v172 = vld [vmem:[#allocation7 + $0x84] sm:$0xf]
    %v173 = vld [vmem:[#allocation7 + $0x88] sm:$0xf]
    %v174 = vld [vmem:[#allocation7 + $0x8c] sm:$0xf]
    %v175 = vld [vmem:[#allocation7 + $0x90] sm:$0xf]
    %v176 = vld [vmem:[#allocation7 + $0x94] sm:$0xf]
    %v177 = vld [vmem:[#allocation7 + $0x98] sm:$0xf]
    %v178 = vld [vmem:[#allocation7 + $0x9c] sm:$0xf]
    %v179 = vld [vmem:[#allocation7 + $0xa0] sm:$0xf]
    %v180 = vld [vmem:[#allocation7 + $0xa4] sm:$0xf]
    %v181 = vld [vmem:[#allocation7 + $0xa8] sm:$0xf]
    %v182 = vld [vmem:[#allocation7 + $0xac] sm:$0xf]
    %v183 = vld [vmem:[#allocation7 + $0xb0] sm:$0xf]
    %v184 = vld [vmem:[#allocation7 + $0xb4] sm:$0xf]
    %v185 = vld [vmem:[#allocation7 + $0xb8] sm:$0xf]
    %v186 = vld [vmem:[#allocation7 + $0xbc] sm:$0xf]
    %v187 = vld [vmem:[#allocation7 + $0xc0] sm:$0xf]
    %v188 = vld [vmem:[#allocation7 + $0xc4] sm:$0xf]
    %v189 = vld [vmem:[#allocation7 + $0xc8] sm:$0xf]
    %v190 = vld [vmem:[#allocation7 + $0xcc] sm:$0xf]
    %v191 = vld [vmem:[#allocation7 + $0xd0] sm:$0xf]
    %v192 = vld [vmem:[#allocation7 + $0xd4] sm:$0xf]
    %v193 = vld [vmem:[#allocation7 + $0xd8] sm:$0xf]
    %v194 = vld [vmem:[#allocation7 + $0xdc] sm:$0xf]
    %v195 = vld [vmem:[#allocation7 + $0xe0] sm:$0xf]
    %v196 = vld [vmem:[#allocation7 + $0xe4] sm:$0xf]
    %v197 = vld [vmem:[#allocation7 + $0xe8] sm:$0xf]
    %v198 = vld [vmem:[#allocation7 + $0xec] sm:$0xf]
    %v199 = vld [vmem:[#allocation7 + $0xf0] sm:$0xf]
    %v200 = vld [vmem:[#allocation7 + $0xf4] sm:$0xf]
    %v201 = vld [vmem:[#allocation7 + $0xf8] sm:$0xf]
    %v202 = vld [vmem:[#allocation7 + $0xfc] sm:$0xf]
    %v203 = vld [vmem:[#allocation7 + $0x100] sm:$0xf]
    %v204 = vld [vmem:[#allocation7 + $0x104] sm:$0xf]
    %v205 = vld [vmem:[#allocation7 + $0x108] sm:$0xf]
    %v206 = vld [vmem:[#allocation7 + $0x10c] sm:$0xf]
    %v207 = vld [vmem:[#allocation7 + $0x110] sm:$0xf]
    %v208 = vld [vmem:[#allocation7 + $0x114] sm:$0xf]
    %v209 = vld [vmem:[#allocation7 + $0x118] sm:$0xf]
    %v210 = vld [vmem:[#allocation7 + $0x11c] sm:$0xf]
    %v211 = vld [vmem:[#allocation7 + $0x120] sm:$0xf]
    %v212 = vld [vmem:[#allocation7 + $0x124] sm:$0xf]
    %v213 = vld [vmem:[#allocation7 + $0x128] sm:$0xf]
    %v214 = vld [vmem:[#allocation7 + $0x12c] sm:$0xf]
    %v215 = vld [vmem:[#allocation7 + $0x130] sm:$0xf]
    %v216 = vld [vmem:[#allocation7 + $0x134] sm:$0xf]
    %v217 = vld [vmem:[#allocation7 + $0x138] sm:$0xf]
    %v218 = vld [vmem:[#allocation7 + $0x13c] sm:$0xf]
    %v219 = vld [vmem:[#allocation7 + $0x140] sm:$0xf]
    %v220 = vld [vmem:[#allocation7 + $0x144] sm:$0xf]
    %v221 = vld [vmem:[#allocation7 + $0x148] sm:$0xf]
    %v222 = vld [vmem:[#allocation7 + $0x14c] sm:$0xf]
    %v223 = vld [vmem:[#allocation7 + $0x150] sm:$0xf]
    %v224 = vld [vmem:[#allocation7 + $0x154] sm:$0xf]
    %v225 = vld [vmem:[#allocation7 + $0x158] sm:$0xf]
    %v226 = vld [vmem:[#allocation7 + $0x15c] sm:$0xf]
    %v227 = vld [vmem:[#allocation7 + $0x160] sm:$0xf]
    %v228 = vld [vmem:[#allocation7 + $0x164] sm:$0xf]
    %v229 = vld [vmem:[#allocation7 + $0x168] sm:$0xf]
    %v230 = vld [vmem:[#allocation7 + $0x16c] sm:$0xf]
    %v231 = vld [vmem:[#allocation7 + $0x170] sm:$0xf]
    %v232 = vld [vmem:[#allocation7 + $0x174] sm:$0xf]
    %v233 = vld [vmem:[#allocation7 + $0x178] sm:$0xf]
    %v234 = vld [vmem:[#allocation7 + $0x17c] sm:$0xf]
    %v235 = vld [vmem:[#allocation7 + $0x180] sm:$0xf]
    %v236 = vld [vmem:[#allocation7 + $0x184] sm:$0xf]
    %v237 = vld [vmem:[#allocation7 + $0x188] sm:$0xf]
    %v238 = vld [vmem:[#allocation7 + $0x18c] sm:$0xf]
    %v239 = vld [vmem:[#allocation7 + $0x190] sm:$0xf]
    %v240 = vld [vmem:[#allocation7 + $0x194] sm:$0xf]
    %v241 = vld [vmem:[#allocation7 + $0x198] sm:$0xf]
    %v242 = vld [vmem:[#allocation7 + $0x19c] sm:$0xf]
    %v243 = vld [vmem:[#allocation7 + $0x1a0] sm:$0xf]
    %v244 = vld [vmem:[#allocation7 + $0x1a4] sm:$0xf]
    %v245 = vld [vmem:[#allocation7 + $0x1a8] sm:$0xf]
    %v246 = vld [vmem:[#allocation7 + $0x1ac] sm:$0xf]
    %v247 = vld [vmem:[#allocation7 + $0x1b0] sm:$0xf]
    %v248 = vld [vmem:[#allocation7 + $0x1b4] sm:$0xf]
    %v249 = vld [vmem:[#allocation7 + $0x1b8] sm:$0xf]
    %v250 = vld [vmem:[#allocation7 + $0x1bc] sm:$0xf]
    %v251 = vld [vmem:[#allocation8] ss:$8 sm:$0x3]
    %s252 = scalar_lea.vmem [#allocation8], 1
    %v253 = vld [vmem:[%s252] ss:$8 sm:$0x3]
    %s254 = scalar_lea.vmem [#allocation8], 2
    %v255 = vld [vmem:[%s254] ss:$8 sm:$0x3]
    %v256 = vld [vmem:[%s4] sm:$0x1]
    %v257 = vld [vmem:[%s4 + $0x1] sm:$0x1]
    %v258 = vld [vmem:[%s4 + $0x2] sm:$0x1]
    %v259 = vld [vmem:[%s4 + $0x3] sm:$0x1]
    %v260 = vld [vmem:[%s4 + $0x4] sm:$0x1]
    %v261 = vpack.c.bf16 %v73, %v73
    %v263 = vlaneseq
    %v264 = vshrl.u32 %v263, 7
    %v265 = vsub.s32 0, %v264
    %v266 = vrot.slane %v251, %v265
    %v267 = vlaneseq
    %v268 = vshrl.u32 %v267, 7
    %v269 = vsub.s32 1, %v268
    %v270 = vrot.slane %v251, %v269
    %v289 = vunpack.c.l.b16 %v75
    %v290 = vunpack.c.h.b16 %v75
    %v291 = vunpack.c.l.b16 %v76
    %v292 = vunpack.c.h.b16 %v76
    %v293 = vunpack.c.l.b16 %v77
    %v294 = vunpack.c.h.b16 %v77
    %v295 = vunpack.c.l.b16 %v78
    %v296 = vunpack.c.h.b16 %v78
    %v297 = vunpack.c.l.b16 %v79
    %v298 = vunpack.c.h.b16 %v79
    %v299 = vunpack.c.l.b16 %v80
    %v300 = vunpack.c.h.b16 %v80
    %v301 = vunpack.c.l.b16 %v81
    %v302 = vunpack.c.h.b16 %v81
    %v303 = vunpack.c.l.b16 %v82
    %v304 = vunpack.c.h.b16 %v82
    %v305 = vunpack.c.l.b16 %v83
    %v306 = vunpack.c.h.b16 %v83
    %v307 = vunpack.c.l.b16 %v84
    %v308 = vunpack.c.h.b16 %v84
    %v309 = vunpack.c.l.b16 %v85
    %v310 = vunpack.c.h.b16 %v85
    %v311 = vunpack.c.l.b16 %v86
    %v312 = vunpack.c.h.b16 %v86
    %v313 = vunpack.c.l.b16 %v87
    %v314 = vunpack.c.h.b16 %v87
    %v315 = vunpack.c.l.b16 %v88
    %v316 = vunpack.c.h.b16 %v88
    %v317 = vunpack.c.l.b16 %v89
    %v318 = vunpack.c.h.b16 %v89
    %v319 = vunpack.c.l.b16 %v90
    %v320 = vunpack.c.h.b16 %v90
    %v321 = vpack.c.b16 %v291, %v289
    %v322 = vpack.c.b16 %v292, %v290
    %v323 = vpack.c.b16 %v295, %v293
    %v324 = vpack.c.b16 %v296, %v294
    %v325 = vpack.c.b16 %v299, %v297
    %v326 = vpack.c.b16 %v300, %v298
    %v327 = vpack.c.b16 %v303, %v301
    %v328 = vpack.c.b16 %v304, %v302
    %v329 = vpack.c.b16 %v307, %v305
    %v330 = vpack.c.b16 %v308, %v306
    %v331 = vpack.c.b16 %v311, %v309
    %v332 = vpack.c.b16 %v312, %v310
    %v333 = vpack.c.b16 %v315, %v313
    %v334 = vpack.c.b16 %v316, %v314
    %v335 = vpack.c.b16 %v319, %v317
    %v336 = vpack.c.b16 %v320, %v318
    %353 = vmatprep.subr.bf16.mxu0 %v322
    %354 = vmatpush1.bf16.msra.mxu0 %v321
    %355 = vmatprep.subr.bf16.mxu0 %v324
    %356 = vmatpush1.bf16.msra.mxu0 %v323
    %357 = vmatprep.subr.bf16.mxu0 %v326
    %358 = vmatpush1.bf16.msra.mxu0 %v325
    %359 = vmatprep.subr.bf16.mxu0 %v328
    %360 = vmatpush1.bf16.msra.mxu0 %v327
    %361 = vmatprep.subr.bf16.mxu0 %v330
    %362 = vmatpush1.bf16.msra.mxu0 %v329
    %363 = vmatprep.subr.bf16.mxu0 %v332
    %364 = vmatpush1.bf16.msra.mxu0 %v331
    %365 = vmatprep.subr.bf16.mxu0 %v334
    %366 = vmatpush1.bf16.msra.mxu0 %v333
    %367 = vmatprep.subr.bf16.mxu0 %v336
    %368 = vmatpush1.bf16.msra.mxu0 %v335
    %369 = vmatprep.subr.bf16.mxu0 0
    %370 = vmatpush1.bf16.msra.mxu0 0
    %371 = vmatprep.subr.bf16.mxu0 0
    %372 = vmatpush1.bf16.msra.mxu0 0
    %373 = vmatprep.subr.bf16.mxu0 0
    %374 = vmatpush1.bf16.msra.mxu0 0
    %375 = vmatprep.subr.bf16.mxu0 0
    %376 = vmatpush1.bf16.msra.mxu0 0
    %377 = vmatprep.subr.bf16.mxu0 0
    %378 = vmatpush1.bf16.msra.mxu0 0
    %379 = vmatprep.subr.bf16.mxu0 0
    %380 = vmatpush1.bf16.msra.mxu0 0
    %381 = vmatprep.subr.bf16.mxu0 0
    %382 = vmatpush1.bf16.msra.mxu0 0
    %383 = vmatprep.subr.bf16.mxu0 0
    %384 = vmatpush1.bf16.msra.mxu0 0
    %385 = vmatprep.mubr.bf16.mxu0 0
    %386 = vmatmul.mubr.bf16.gmra.mrb[0].mxu0 %v261
    %v387 = vpop.f32.mrb[0].mxu0
    %v388 = vadd.f32 %v266, %v387
    %v389 = vpop.f32.mrb[0].mxu0
    %v390 = vadd.f32 %v270, %v389
    %v391 = vpop.f32.mrb[0].mxu0
    %v392 = vpop.f32.mrb[0].mxu0
    %393 = vdwg.mxu0
    %v394 = vmax.f32 %v388, 0.0
    %v395 = vmax.f32 %v390, 0.0
    %v396 = vadd.f32 %v394, %v74
    %v397 = vpack.c.bf16 %v396, %v396
    %v398 = vpack.c.bf16 %v395, %v395
    %v415 = vunpack.c.l.b16 %v107
    %v416 = vunpack.c.h.b16 %v107
    %v417 = vunpack.c.l.b16 %v108
    %v418 = vunpack.c.h.b16 %v108
    %v419 = vunpack.c.l.b16 %v109
    %v420 = vunpack.c.h.b16 %v109
    %v421 = vunpack.c.l.b16 %v110
    %v422 = vunpack.c.h.b16 %v110
    %v423 = vunpack.c.l.b16 %v111
    %v424 = vunpack.c.h.b16 %v111
    %v425 = vunpack.c.l.b16 %v112
    %v426 = vunpack.c.h.b16 %v112
    %v427 = vunpack.c.l.b16 %v113
    %v428 = vunpack.c.h.b16 %v113
    %v429 = vunpack.c.l.b16 %v114
    %v430 = vunpack.c.h.b16 %v114
    %v431 = vunpack.c.l.b16 %v115
    %v432 = vunpack.c.h.b16 %v115
    %v433 = vunpack.c.l.b16 %v116
    %v434 = vunpack.c.h.b16 %v116
    %v435 = vunpack.c.l.b16 %v117
    %v436 = vunpack.c.h.b16 %v117
    %v437 = vunpack.c.l.b16 %v118
    %v438 = vunpack.c.h.b16 %v118
    %v439 = vunpack.c.l.b16 %v119
    %v440 = vunpack.c.h.b16 %v119
    %v441 = vunpack.c.l.b16 %v120
    %v442 = vunpack.c.h.b16 %v120
    %v443 = vunpack.c.l.b16 %v121
    %v444 = vunpack.c.h.b16 %v121
    %v445 = vunpack.c.l.b16 %v122
    %v446 = vunpack.c.h.b16 %v122
    %v447 = vpack.c.b16 %v417, %v415
    %v448 = vpack.c.b16 %v418, %v416
    %v449 = vpack.c.b16 %v421, %v419
    %v450 = vpack.c.b16 %v422, %v420
    %v451 = vpack.c.b16 %v425, %v423
    %v452 = vpack.c.b16 %v426, %v424
    %v453 = vpack.c.b16 %v429, %v427
    %v454 = vpack.c.b16 %v430, %v428
    %v455 = vpack.c.b16 %v433, %v431
    %v456 = vpack.c.b16 %v434, %v432
    %v457 = vpack.c.b16 %v437, %v435
    %v458 = vpack.c.b16 %v438, %v436
    %v459 = vpack.c.b16 %v441, %v439
    %v460 = vpack.c.b16 %v442, %v440
    %v461 = vpack.c.b16 %v445, %v443
    %v462 = vpack.c.b16 %v446, %v444
    %479 = vmatprep.subr.bf16.mxu0 %v448
    %480 = vmatpush1.bf16.msra.mxu0 %v447
    %481 = vmatprep.subr.bf16.mxu0 %v450
    %482 = vmatpush1.bf16.msra.mxu0 %v449
    %483 = vmatprep.subr.bf16.mxu0 %v452
    %484 = vmatpush1.bf16.msra.mxu0 %v451
    %485 = vmatprep.subr.bf16.mxu0 %v454
    %486 = vmatpush1.bf16.msra.mxu0 %v453
    %487 = vmatprep.subr.bf16.mxu0 %v456
    %488 = vmatpush1.bf16.msra.mxu0 %v455
    %489 = vmatprep.subr.bf16.mxu0 %v458
    %490 = vmatpush1.bf16.msra.mxu0 %v457
    %491 = vmatprep.subr.bf16.mxu0 %v460
    %492 = vmatpush1.bf16.msra.mxu0 %v459
    %493 = vmatprep.subr.bf16.mxu0 %v462
    %494 = vmatpush1.bf16.msra.mxu0 %v461
    %495 = vmatprep.subr.bf16.mxu0 0
    %496 = vmatpush1.bf16.msra.mxu0 0
    %497 = vmatprep.subr.bf16.mxu0 0
    %498 = vmatpush1.bf16.msra.mxu0 0
    %499 = vmatprep.subr.bf16.mxu0 0
    %500 = vmatpush1.bf16.msra.mxu0 0
    %501 = vmatprep.subr.bf16.mxu0 0
    %502 = vmatpush1.bf16.msra.mxu0 0
    %503 = vmatprep.subr.bf16.mxu0 0
    %504 = vmatpush1.bf16.msra.mxu0 0
    %505 = vmatprep.subr.bf16.mxu0 0
    %506 = vmatpush1.bf16.msra.mxu0 0
    %507 = vmatprep.subr.bf16.mxu0 0
    %508 = vmatpush1.bf16.msra.mxu0 0
    %509 = vmatprep.subr.bf16.mxu0 0
    %510 = vmatpush1.bf16.msra.mxu0 0
    %511 = vmatprep.mubr.bf16.mxu0 0
    %512 = vmatmul.mubr.bf16.gmra.mrb[0].mxu0 %v398
    %v513 = vpop.f32.mrb[0].mxu0
    %v514 = vadd.f32 0.0, %v513
    %v515 = vpop.f32.mrb[0].mxu0
    %v516 = vadd.f32 0.0, %v515
    %v517 = vpop.f32.mrb[0].mxu0
    %v518 = vpop.f32.mrb[0].mxu0
    %519 = vdwg.mxu0
    %v536 = vunpack.c.l.b16 %v91
    %v537 = vunpack.c.h.b16 %v91
    %v538 = vunpack.c.l.b16 %v92
    %v539 = vunpack.c.h.b16 %v92
    %v540 = vunpack.c.l.b16 %v93
    %v541 = vunpack.c.h.b16 %v93
    %v542 = vunpack.c.l.b16 %v94
    %v543 = vunpack.c.h.b16 %v94
    %v544 = vunpack.c.l.b16 %v95
    %v545 = vunpack.c.h.b16 %v95
    %v546 = vunpack.c.l.b16 %v96
    %v547 = vunpack.c.h.b16 %v96
    %v548 = vunpack.c.l.b16 %v97
    %v549 = vunpack.c.h.b16 %v97
    %v550 = vunpack.c.l.b16 %v98
    %v551 = vunpack.c.h.b16 %v98
    %v552 = vunpack.c.l.b16 %v99
    %v553 = vunpack.c.h.b16 %v99
    %v554 = vunpack.c.l.b16 %v100
    %v555 = vunpack.c.h.b16 %v100
    %v556 = vunpack.c.l.b16 %v101
    %v557 = vunpack.c.h.b16 %v101
    %v558 = vunpack.c.l.b16 %v102
    %v559 = vunpack.c.h.b16 %v102
    %v560 = vunpack.c.l.b16 %v103
    %v561 = vunpack.c.h.b16 %v103
    %v562 = vunpack.c.l.b16 %v104
    %v563 = vunpack.c.h.b16 %v104
    %v564 = vunpack.c.l.b16 %v105
    %v565 = vunpack.c.h.b16 %v105
    %v566 = vunpack.c.l.b16 %v106
    %v567 = vunpack.c.h.b16 %v106
    %v568 = vpack.c.b16 %v538, %v536
    %v569 = vpack.c.b16 %v539, %v537
    %v570 = vpack.c.b16 %v542, %v540
    %v571 = vpack.c.b16 %v543, %v541
    %v572 = vpack.c.b16 %v546, %v544
    %v573 = vpack.c.b16 %v547, %v545
    %v574 = vpack.c.b16 %v550, %v548
    %v575 = vpack.c.b16 %v551, %v549
    %v576 = vpack.c.b16 %v554, %v552
    %v577 = vpack.c.b16 %v555, %v553
    %v578 = vpack.c.b16 %v558, %v556
    %v579 = vpack.c.b16 %v559, %v557
    %v580 = vpack.c.b16 %v562, %v560
    %v581 = vpack.c.b16 %v563, %v561
    %v582 = vpack.c.b16 %v566, %v564
    %v583 = vpack.c.b16 %v567, %v565
    %600 = vmatprep.subr.bf16.mxu0 %v569
    %601 = vmatpush1.bf16.msra.mxu0 %v568
    %602 = vmatprep.subr.bf16.mxu0 %v571
    %603 = vmatpush1.bf16.msra.mxu0 %v570
    %604 = vmatprep.subr.bf16.mxu0 %v573
    %605 = vmatpush1.bf16.msra.mxu0 %v572
    %606 = vmatprep.subr.bf16.mxu0 %v575
    %607 = vmatpush1.bf16.msra.mxu0 %v574
    %608 = vmatprep.subr.bf16.mxu0 %v577
    %609 = vmatpush1.bf16.msra.mxu0 %v576
    %610 = vmatprep.subr.bf16.mxu0 %v579
    %611 = vmatpush1.bf16.msra.mxu0 %v578
    %612 = vmatprep.subr.bf16.mxu0 %v581
    %613 = vmatpush1.bf16.msra.mxu0 %v580
    %614 = vmatprep.subr.bf16.mxu0 %v583
    %615 = vmatpush1.bf16.msra.mxu0 %v582
    %616 = vmatprep.subr.bf16.mxu0 0
    %617 = vmatpush1.bf16.msra.mxu0 0
    %618 = vmatprep.subr.bf16.mxu0 0
    %619 = vmatpush1.bf16.msra.mxu0 0
    %620 = vmatprep.subr.bf16.mxu0 0
    %621 = vmatpush1.bf16.msra.mxu0 0
    %622 = vmatprep.subr.bf16.mxu0 0
    %623 = vmatpush1.bf16.msra.mxu0 0
    %624 = vmatprep.subr.bf16.mxu0 0
    %625 = vmatpush1.bf16.msra.mxu0 0
    %626 = vmatprep.subr.bf16.mxu0 0
    %627 = vmatpush1.bf16.msra.mxu0 0
    %628 = vmatprep.subr.bf16.mxu0 0
    %629 = vmatpush1.bf16.msra.mxu0 0
    %630 = vmatprep.subr.bf16.mxu0 0
    %631 = vmatpush1.bf16.msra.mxu0 0
    %632 = vmatprep.mubr.bf16.mxu0 0
    %633 = vmatmul.mubr.bf16.gmra.mrb[0].mxu0 %v397
    %v634 = vpop.f32.mrb[0].mxu0
    %v635 = vadd.f32 %v514, %v634
    %v636 = vpop.f32.mrb[0].mxu0
    %v637 = vadd.f32 %v516, %v636
    %v638 = vpop.f32.mrb[0].mxu0
    %v639 = vpop.f32.mrb[0].mxu0
    %640 = vdwg.mxu0
    %v642 = vlaneseq
    %v643 = vshrl.u32 %v642, 7
    %v644 = vsub.s32 0, %v643
    %v645 = vrot.slane %v253, %v644
    %v646 = vlaneseq
    %v647 = vshrl.u32 %v646, 7
    %v648 = vsub.s32 1, %v647
    %v649 = vrot.slane %v253, %v648
    %v652 = vadd.f32 %v635, %v645
    %v653 = vadd.f32 %v637, %v649
    %v654 = vmax.f32 %v652, 0.0
    %v655 = vmax.f32 %v653, 0.0
    %v656 = vpack.c.bf16 %v654, %v654
    %v657 = vlaneseq
    %v658 = vshrl.u32 %v657, 7
    %v659 = vsub.s32 0, %v658
    %v660 = vrot.slane %v256, %v659
    %v677 = vunpack.c.l.b16 %v139
    %v678 = vunpack.c.l.b16 %v140
    %v679 = vunpack.c.l.b16 %v141
    %v680 = vunpack.c.l.b16 %v142
    %v681 = vunpack.c.l.b16 %v143
    %v682 = vunpack.c.l.b16 %v144
    %v683 = vunpack.c.l.b16 %v145
    %v684 = vunpack.c.l.b16 %v146
    %v685 = vunpack.c.l.b16 %v147
    %v686 = vunpack.c.l.b16 %v148
    %v687 = vunpack.c.l.b16 %v149
    %v688 = vunpack.c.l.b16 %v150
    %v689 = vunpack.c.l.b16 %v151
    %v690 = vunpack.c.l.b16 %v152
    %v691 = vunpack.c.l.b16 %v153
    %v692 = vunpack.c.l.b16 %v154
    %v693 = vpack.c.b16 %v678, %v677
    %v694 = vpack.c.b16 %v680, %v679
    %v695 = vpack.c.b16 %v682, %v681
    %v696 = vpack.c.b16 %v684, %v683
    %v697 = vpack.c.b16 %v686, %v685
    %v698 = vpack.c.b16 %v688, %v687
    %v699 = vpack.c.b16 %v690, %v689
    %v700 = vpack.c.b16 %v692, %v691
    %709 = vmatprep.subr.bf16.mxu0 0
    %710 = vmatpush1.bf16.msra.mxu0 %v693
    %711 = vmatprep.subr.bf16.mxu0 0
    %712 = vmatpush1.bf16.msra.mxu0 %v694
    %713 = vmatprep.subr.bf16.mxu0 0
    %714 = vmatpush1.bf16.msra.mxu0 %v695
    %715 = vmatprep.subr.bf16.mxu0 0
    %716 = vmatpush1.bf16.msra.mxu0 %v696
    %717 = vmatprep.subr.bf16.mxu0 0
    %718 = vmatpush1.bf16.msra.mxu0 %v697
    %719 = vmatprep.subr.bf16.mxu0 0
    %720 = vmatpush1.bf16.msra.mxu0 %v698
    %721 = vmatprep.subr.bf16.mxu0 0
    %722 = vmatpush1.bf16.msra.mxu0 %v699
    %723 = vmatprep.subr.bf16.mxu0 0
    %724 = vmatpush1.bf16.msra.mxu0 %v700
    %725 = vmatprep.subr.bf16.mxu0 0
    %726 = vmatpush1.bf16.msra.mxu0 0
    %727 = vmatprep.subr.bf16.mxu0 0
    %728 = vmatpush1.bf16.msra.mxu0 0
    %729 = vmatprep.subr.bf16.mxu0 0
    %730 = vmatpush1.bf16.msra.mxu0 0
    %731 = vmatprep.subr.bf16.mxu0 0
    %732 = vmatpush1.bf16.msra.mxu0 0
    %733 = vmatprep.subr.bf16.mxu0 0
    %734 = vmatpush1.bf16.msra.mxu0 0
    %735 = vmatprep.subr.bf16.mxu0 0
    %736 = vmatpush1.bf16.msra.mxu0 0
    %737 = vmatprep.subr.bf16.mxu0 0
    %738 = vmatpush1.bf16.msra.mxu0 0
    %739 = vmatprep.subr.bf16.mxu0 0
    %740 = vmatpush1.bf16.msra.mxu0 0
    %741 = vmatprep.mubr.bf16.mxu0 0
    %742 = vmatmul.mubr.bf16.gmra.mrb[0].mxu0 %v656
    %v743 = vpop.f32.mrb[0].mxu0
    %v744 = vadd.f32 %v660, %v743
    %v745 = vpop.f32.mrb[0].mxu0
    %v746 = vpop.f32.mrb[0].mxu0
    %v747 = vpop.f32.mrb[0].mxu0
    %748 = vdwg.mxu0
    %v749 = vxor.u32 %v744, 2147483648
    %v750 = vmul.f32 %v749, 1.442695
    %v751 = vpow.pop %v750
    %v752 = vadd.f32 %v751, 1.0
    %v753 = vrcp.pop %v752
    %v754 = vmul.f32 1.0, %v753
    %v755 = vpack.c.bf16 %v655, %v655
    %v756 = vlaneseq
    %v757 = vshrl.u32 %v756, 7
    %v758 = vsub.s32 0, %v757
    %v759 = vrot.slane %v257, %v758
    %v776 = vunpack.c.l.b16 %v155
    %v777 = vunpack.c.l.b16 %v156
    %v778 = vunpack.c.l.b16 %v157
    %v779 = vunpack.c.l.b16 %v158
    %v780 = vunpack.c.l.b16 %v159
    %v781 = vunpack.c.l.b16 %v160
    %v782 = vunpack.c.l.b16 %v161
    %v783 = vunpack.c.l.b16 %v162
    %v784 = vunpack.c.l.b16 %v163
    %v785 = vunpack.c.l.b16 %v164
    %v786 = vunpack.c.l.b16 %v165
    %v787 = vunpack.c.l.b16 %v166
    %v788 = vunpack.c.l.b16 %v167
    %v789 = vunpack.c.l.b16 %v168
    %v790 = vunpack.c.l.b16 %v169
    %v791 = vunpack.c.l.b16 %v170
    %v792 = vpack.c.b16 %v777, %v776
    %v793 = vpack.c.b16 %v779, %v778
    %v794 = vpack.c.b16 %v781, %v780
    %v795 = vpack.c.b16 %v783, %v782
    %v796 = vpack.c.b16 %v785, %v784
    %v797 = vpack.c.b16 %v787, %v786
    %v798 = vpack.c.b16 %v789, %v788
    %v799 = vpack.c.b16 %v791, %v790
    %808 = vmatprep.subr.bf16.mxu0 0
    %809 = vmatpush1.bf16.msra.mxu0 %v792
    %810 = vmatprep.subr.bf16.mxu0 0
    %811 = vmatpush1.bf16.msra.mxu0 %v793
    %812 = vmatprep.subr.bf16.mxu0 0
    %813 = vmatpush1.bf16.msra.mxu0 %v794
    %814 = vmatprep.subr.bf16.mxu0 0
    %815 = vmatpush1.bf16.msra.mxu0 %v795
    %816 = vmatprep.subr.bf16.mxu0 0
    %817 = vmatpush1.bf16.msra.mxu0 %v796
    %818 = vmatprep.subr.bf16.mxu0 0
    %819 = vmatpush1.bf16.msra.mxu0 %v797
    %820 = vmatprep.subr.bf16.mxu0 0
    %821 = vmatpush1.bf16.msra.mxu0 %v798
    %822 = vmatprep.subr.bf16.mxu0 0
    %823 = vmatpush1.bf16.msra.mxu0 %v799
    %824 = vmatprep.subr.bf16.mxu0 0
    %825 = vmatpush1.bf16.msra.mxu0 0
    %826 = vmatprep.subr.bf16.mxu0 0
    %827 = vmatpush1.bf16.msra.mxu0 0
    %828 = vmatprep.subr.bf16.mxu0 0
    %829 = vmatpush1.bf16.msra.mxu0 0
    %830 = vmatprep.subr.bf16.mxu0 0
    %831 = vmatpush1.bf16.msra.mxu0 0
    %832 = vmatprep.subr.bf16.mxu0 0
    %833 = vmatpush1.bf16.msra.mxu0 0
    %834 = vmatprep.subr.bf16.mxu0 0
    %835 = vmatpush1.bf16.msra.mxu0 0
    %836 = vmatprep.subr.bf16.mxu0 0
    %837 = vmatpush1.bf16.msra.mxu0 0
    %838 = vmatprep.subr.bf16.mxu0 0
    %839 = vmatpush1.bf16.msra.mxu0 0
    %840 = vmatprep.mubr.bf16.mxu0 0
    %841 = vmatmul.mubr.bf16.gmra.mrb[0].mxu0 %v755
    %v842 = vpop.f32.mrb[0].mxu0
    %v843 = vadd.f32 %v759, %v842
    %v844 = vpop.f32.mrb[0].mxu0
    %v845 = vpop.f32.mrb[0].mxu0
    %v846 = vpop.f32.mrb[0].mxu0
    %847 = vdwg.mxu0
    %v848 = vxor.u32 %v843, 2147483648
    %v849 = vmul.f32 %v848, 1.442695
    %v850 = vpow.pop %v849
    %v851 = vadd.f32 %v850, 1.0
    %v852 = vrcp.pop %v851
    %v853 = vmul.f32 1.0, %v852
    %v854 = vlaneseq
    %v855 = vand.u32 %v854, 127
    %vm856 = vcmp.lt.s32.totalorder %v855, 16
    %v857 = vsel %vm856, 1, 0
    %vm858 = vcmp.eq.s32.totalorder %v857, 1
    %v859 = vsel %vm858, %v853, 1.0
    %v860 = vmul.f32 %v396, %v859
    %v861 = vpack.c.bf16 %v860, %v860
    %v862 = vmul.f32 %v395, %v853
    %v863 = vpack.c.bf16 %v862, %v862
    %v880 = vunpack.c.l.b16 %v187
    %v881 = vunpack.c.l.b16 %v188
    %v882 = vunpack.c.l.b16 %v189
    %v883 = vunpack.c.l.b16 %v190
    %v884 = vunpack.c.l.b16 %v191
    %v885 = vunpack.c.l.b16 %v192
    %v886 = vunpack.c.l.b16 %v193
    %v887 = vunpack.c.l.b16 %v194
    %v888 = vunpack.c.l.b16 %v195
    %v889 = vunpack.c.l.b16 %v196
    %v890 = vunpack.c.l.b16 %v197
    %v891 = vunpack.c.l.b16 %v198
    %v892 = vunpack.c.l.b16 %v199
    %v893 = vunpack.c.l.b16 %v200
    %v894 = vunpack.c.l.b16 %v201
    %v895 = vunpack.c.l.b16 %v202
    %v896 = vpack.c.b16 %v881, %v880
    %v897 = vpack.c.b16 %v883, %v882
    %v898 = vpack.c.b16 %v885, %v884
    %v899 = vpack.c.b16 %v887, %v886
    %v900 = vpack.c.b16 %v889, %v888
    %v901 = vpack.c.b16 %v891, %v890
    %v902 = vpack.c.b16 %v893, %v892
    %v903 = vpack.c.b16 %v895, %v894
    %912 = vmatprep.subr.bf16.mxu0 0
    %913 = vmatpush1.bf16.msra.mxu0 %v896
    %914 = vmatprep.subr.bf16.mxu0 0
    %915 = vmatpush1.bf16.msra.mxu0 %v897
    %916 = vmatprep.subr.bf16.mxu0 0
    %917 = vmatpush1.bf16.msra.mxu0 %v898
    %918 = vmatprep.subr.bf16.mxu0 0
    %919 = vmatpush1.bf16.msra.mxu0 %v899
    %920 = vmatprep.subr.bf16.mxu0 0
    %921 = vmatpush1.bf16.msra.mxu0 %v900
    %922 = vmatprep.subr.bf16.mxu0 0
    %923 = vmatpush1.bf16.msra.mxu0 %v901
    %924 = vmatprep.subr.bf16.mxu0 0
    %925 = vmatpush1.bf16.msra.mxu0 %v902
    %926 = vmatprep.subr.bf16.mxu0 0
    %927 = vmatpush1.bf16.msra.mxu0 %v903
    %928 = vmatprep.subr.bf16.mxu0 0
    %929 = vmatpush1.bf16.msra.mxu0 0
    %930 = vmatprep.subr.bf16.mxu0 0
    %931 = vmatpush1.bf16.msra.mxu0 0
    %932 = vmatprep.subr.bf16.mxu0 0
    %933 = vmatpush1.bf16.msra.mxu0 0
    %934 = vmatprep.subr.bf16.mxu0 0
    %935 = vmatpush1.bf16.msra.mxu0 0
    %936 = vmatprep.subr.bf16.mxu0 0
    %937 = vmatpush1.bf16.msra.mxu0 0
    %938 = vmatprep.subr.bf16.mxu0 0
    %939 = vmatpush1.bf16.msra.mxu0 0
    %940 = vmatprep.subr.bf16.mxu0 0
    %941 = vmatpush1.bf16.msra.mxu0 0
    %942 = vmatprep.subr.bf16.mxu0 0
    %943 = vmatpush1.bf16.msra.mxu0 0
    %944 = vmatprep.mubr.bf16.mxu0 0
    %945 = vmatmul.mubr.bf16.gmra.mrb[0].mxu0 %v863
    %v946 = vpop.f32.mrb[0].mxu0
    %v947 = vadd.f32 0.0, %v946
    %v948 = vpop.f32.mrb[0].mxu0
    %v949 = vpop.f32.mrb[0].mxu0
    %v950 = vpop.f32.mrb[0].mxu0
    %951 = vdwg.mxu0
    %v968 = vunpack.c.l.b16 %v171
    %v969 = vunpack.c.l.b16 %v172
    %v970 = vunpack.c.l.b16 %v173
    %v971 = vunpack.c.l.b16 %v174
    %v972 = vunpack.c.l.b16 %v175
    %v973 = vunpack.c.l.b16 %v176
    %v974 = vunpack.c.l.b16 %v177
    %v975 = vunpack.c.l.b16 %v178
    %v976 = vunpack.c.l.b16 %v179
    %v977 = vunpack.c.l.b16 %v180
    %v978 = vunpack.c.l.b16 %v181
    %v979 = vunpack.c.l.b16 %v182
    %v980 = vunpack.c.l.b16 %v183
    %v981 = vunpack.c.l.b16 %v184
    %v982 = vunpack.c.l.b16 %v185
    %v983 = vunpack.c.l.b16 %v186
    %v984 = vpack.c.b16 %v969, %v968
    %v985 = vpack.c.b16 %v971, %v970
    %v986 = vpack.c.b16 %v973, %v972
    %v987 = vpack.c.b16 %v975, %v974
    %v988 = vpack.c.b16 %v977, %v976
    %v989 = vpack.c.b16 %v979, %v978
    %v990 = vpack.c.b16 %v981, %v980
    %v991 = vpack.c.b16 %v983, %v982
    %1000 = vmatprep.subr.bf16.mxu0 0
    %1001 = vmatpush1.bf16.msra.mxu0 %v984
    %1002 = vmatprep.subr.bf16.mxu0 0
    %1003 = vmatpush1.bf16.msra.mxu0 %v985
    %1004 = vmatprep.subr.bf16.mxu0 0
    %1005 = vmatpush1.bf16.msra.mxu0 %v986
    %1006 = vmatprep.subr.bf16.mxu0 0
    %1007 = vmatpush1.bf16.msra.mxu0 %v987
    %1008 = vmatprep.subr.bf16.mxu0 0
    %1009 = vmatpush1.bf16.msra.mxu0 %v988
    %1010 = vmatprep.subr.bf16.mxu0 0
    %1011 = vmatpush1.bf16.msra.mxu0 %v989
    %1012 = vmatprep.subr.bf16.mxu0 0
    %1013 = vmatpush1.bf16.msra.mxu0 %v990
    %1014 = vmatprep.subr.bf16.mxu0 0
    %1015 = vmatpush1.bf16.msra.mxu0 %v991
    %1016 = vmatprep.subr.bf16.mxu0 0
    %1017 = vmatpush1.bf16.msra.mxu0 0
    %1018 = vmatprep.subr.bf16.mxu0 0
    %1019 = vmatpush1.bf16.msra.mxu0 0
    %1020 = vmatprep.subr.bf16.mxu0 0
    %1021 = vmatpush1.bf16.msra.mxu0 0
    %1022 = vmatprep.subr.bf16.mxu0 0
    %1023 = vmatpush1.bf16.msra.mxu0 0
    %1024 = vmatprep.subr.bf16.mxu0 0
    %1025 = vmatpush1.bf16.msra.mxu0 0
    %1026 = vmatprep.subr.bf16.mxu0 0
    %1027 = vmatpush1.bf16.msra.mxu0 0
    %1028 = vmatprep.subr.bf16.mxu0 0
    %1029 = vmatpush1.bf16.msra.mxu0 0
    %1030 = vmatprep.subr.bf16.mxu0 0
    %1031 = vmatpush1.bf16.msra.mxu0 0
    %1032 = vmatprep.mubr.bf16.mxu0 0
    %1033 = vmatmul.mubr.bf16.gmra.mrb[0].mxu0 %v861
    %v1034 = vpop.f32.mrb[0].mxu0
    %v1035 = vadd.f32 %v947, %v1034
    %v1036 = vpop.f32.mrb[0].mxu0
    %v1037 = vpop.f32.mrb[0].mxu0
    %v1038 = vpop.f32.mrb[0].mxu0
    %1039 = vdwg.mxu0
    %v1040 = vlaneseq
    %v1041 = vshrl.u32 %v1040, 7
    %v1042 = vsub.s32 0, %v1041
    %v1043 = vrot.slane %v258, %v1042
    %v1044 = vadd.f32 %v1035, %v1043
    %v1045 = vmax.f32 %v1044, 0.0
    %v1046 = vpack.c.bf16 %v1045, %v1045
    %v1048 = vlaneseq
    %v1049 = vshrl.u32 %v1048, 7
    %v1050 = vsub.s32 0, %v1049
    %v1051 = vrot.slane %v255, %v1050
    %v1052 = vlaneseq
    %v1053 = vshrl.u32 %v1052, 7
    %v1054 = vsub.s32 1, %v1053
    %v1055 = vrot.slane %v255, %v1054
    %v1074 = vunpack.c.l.b16 %v123
    %v1075 = vunpack.c.h.b16 %v123
    %v1076 = vunpack.c.l.b16 %v124
    %v1077 = vunpack.c.h.b16 %v124
    %v1078 = vunpack.c.l.b16 %v125
    %v1079 = vunpack.c.h.b16 %v125
    %v1080 = vunpack.c.l.b16 %v126
    %v1081 = vunpack.c.h.b16 %v126
    %v1082 = vunpack.c.l.b16 %v127
    %v1083 = vunpack.c.h.b16 %v127
    %v1084 = vunpack.c.l.b16 %v128
    %v1085 = vunpack.c.h.b16 %v128
    %v1086 = vunpack.c.l.b16 %v129
    %v1087 = vunpack.c.h.b16 %v129
    %v1088 = vunpack.c.l.b16 %v130
    %v1089 = vunpack.c.h.b16 %v130
    %v1090 = vunpack.c.l.b16 %v131
    %v1091 = vunpack.c.h.b16 %v131
    %v1092 = vunpack.c.l.b16 %v132
    %v1093 = vunpack.c.h.b16 %v132
    %v1094 = vunpack.c.l.b16 %v133
    %v1095 = vunpack.c.h.b16 %v133
    %v1096 = vunpack.c.l.b16 %v134
    %v1097 = vunpack.c.h.b16 %v134
    %v1098 = vunpack.c.l.b16 %v135
    %v1099 = vunpack.c.h.b16 %v135
    %v1100 = vunpack.c.l.b16 %v136
    %v1101 = vunpack.c.h.b16 %v136
    %v1102 = vunpack.c.l.b16 %v137
    %v1103 = vunpack.c.h.b16 %v137
    %v1104 = vunpack.c.l.b16 %v138
    %v1105 = vunpack.c.h.b16 %v138
    %v1106 = vpack.c.b16 %v1076, %v1074
    %v1107 = vpack.c.b16 %v1077, %v1075
    %v1108 = vpack.c.b16 %v1080, %v1078
    %v1109 = vpack.c.b16 %v1081, %v1079
    %v1110 = vpack.c.b16 %v1084, %v1082
    %v1111 = vpack.c.b16 %v1085, %v1083
    %v1112 = vpack.c.b16 %v1088, %v1086
    %v1113 = vpack.c.b16 %v1089, %v1087
    %v1114 = vpack.c.b16 %v1092, %v1090
    %v1115 = vpack.c.b16 %v1093, %v1091
    %v1116 = vpack.c.b16 %v1096, %v1094
    %v1117 = vpack.c.b16 %v1097, %v1095
    %v1118 = vpack.c.b16 %v1100, %v1098
    %v1119 = vpack.c.b16 %v1101, %v1099
    %v1120 = vpack.c.b16 %v1104, %v1102
    %v1121 = vpack.c.b16 %v1105, %v1103
    %1138 = vmatprep.subr.bf16.mxu0 %v1107
    %1139 = vmatpush1.bf16.msra.mxu0 %v1106
    %1140 = vmatprep.subr.bf16.mxu0 %v1109
    %1141 = vmatpush1.bf16.msra.mxu0 %v1108
    %1142 = vmatprep.subr.bf16.mxu0 %v1111
    %1143 = vmatpush1.bf16.msra.mxu0 %v1110
    %1144 = vmatprep.subr.bf16.mxu0 %v1113
    %1145 = vmatpush1.bf16.msra.mxu0 %v1112
    %1146 = vmatprep.subr.bf16.mxu0 %v1115
    %1147 = vmatpush1.bf16.msra.mxu0 %v1114
    %1148 = vmatprep.subr.bf16.mxu0 %v1117
    %1149 = vmatpush1.bf16.msra.mxu0 %v1116
    %1150 = vmatprep.subr.bf16.mxu0 %v1119
    %1151 = vmatpush1.bf16.msra.mxu0 %v1118
    %1152 = vmatprep.subr.bf16.mxu0 %v1121
    %1153 = vmatpush1.bf16.msra.mxu0 %v1120
    %1154 = vmatprep.subr.bf16.mxu0 0
    %1155 = vmatpush1.bf16.msra.mxu0 0
    %1156 = vmatprep.subr.bf16.mxu0 0
    %1157 = vmatpush1.bf16.msra.mxu0 0
    %1158 = vmatprep.subr.bf16.mxu0 0
    %1159 = vmatpush1.bf16.msra.mxu0 0
    %1160 = vmatprep.subr.bf16.mxu0 0
    %1161 = vmatpush1.bf16.msra.mxu0 0
    %1162 = vmatprep.subr.bf16.mxu0 0
    %1163 = vmatpush1.bf16.msra.mxu0 0
    %1164 = vmatprep.subr.bf16.mxu0 0
    %1165 = vmatpush1.bf16.msra.mxu0 0
    %1166 = vmatprep.subr.bf16.mxu0 0
    %1167 = vmatpush1.bf16.msra.mxu0 0
    %1168 = vmatprep.subr.bf16.mxu0 0
    %1169 = vmatpush1.bf16.msra.mxu0 0
    %1170 = vmatprep.mubr.bf16.mxu0 0
    %1171 = vmatmul.mubr.bf16.gmra.mrb[0].mxu0 %v1046
    %v1172 = vpop.f32.mrb[0].mxu0
    %v1173 = vadd.f32 %v1051, %v1172
    %v1174 = vpop.f32.mrb[0].mxu0
    %v1175 = vadd.f32 %v1055, %v1174
    %v1176 = vpop.f32.mrb[0].mxu0
    %v1177 = vpop.f32.mrb[0].mxu0
    %1178 = vdwg.mxu0
    %v1179 = vand.u32 2147483647, %v1175
    %v1180 = vsub.f32 1.0, %v754
    %v1181 = vmul.f32 %v1180, %v1173
    %v1182 = vmul.f32 %v754, %v396
    %v1183 = vadd.f32 %v1181, %v1182
    %v1184 = vmul.f32 %v1180, %v1179
    %v1185 = vmul.f32 %v754, %v395
    %v1186 = vadd.f32 %v1184, %v1185
    %vm1187 = vcmp.gt.f32.partialorder %v74, 0.5
    %v1188 = vsel %vm1187, 1, 0
    %1189 = vset.pattern.permute.xlu0 127
    %1190 = vperm.xlu0 %1189, %v1188
    %v1191 = vpop.permute.xlu0 %1190
    %vm1192 = vcmp.eq.s32.totalorder %v1191, 1
    %v1193 = vsel %vm1192, %v1183, %v396
    %v1194 = vsel %vm1192, %v1186, %v395
    %v1195 = vpack.c.bf16 %v1193, %v1193
    %v1196 = vpack.c.bf16 %v1194, %v1194
    %v1213 = vunpack.c.l.b16 %v219
    %v1214 = vunpack.c.l.b16 %v220
    %v1215 = vunpack.c.l.b16 %v221
    %v1216 = vunpack.c.l.b16 %v222
    %v1217 = vunpack.c.l.b16 %v223
    %v1218 = vunpack.c.l.b16 %v224
    %v1219 = vunpack.c.l.b16 %v225
    %v1220 = vunpack.c.l.b16 %v226
    %v1221 = vunpack.c.l.b16 %v227
    %v1222 = vunpack.c.l.b16 %v228
    %v1223 = vunpack.c.l.b16 %v229
    %v1224 = vunpack.c.l.b16 %v230
    %v1225 = vunpack.c.l.b16 %v231
    %v1226 = vunpack.c.l.b16 %v232
    %v1227 = vunpack.c.l.b16 %v233
    %v1228 = vunpack.c.l.b16 %v234
    %v1229 = vpack.c.b16 %v1214, %v1213
    %v1230 = vpack.c.b16 %v1216, %v1215
    %v1231 = vpack.c.b16 %v1218, %v1217
    %v1232 = vpack.c.b16 %v1220, %v1219
    %v1233 = vpack.c.b16 %v1222, %v1221
    %v1234 = vpack.c.b16 %v1224, %v1223
    %v1235 = vpack.c.b16 %v1226, %v1225
    %v1236 = vpack.c.b16 %v1228, %v1227
    %1245 = vmatprep.subr.bf16.mxu0 0
    %1246 = vmatpush1.bf16.msra.mxu0 %v1229
    %1247 = vmatprep.subr.bf16.mxu0 0
    %1248 = vmatpush1.bf16.msra.mxu0 %v1230
    %1249 = vmatprep.subr.bf16.mxu0 0
    %1250 = vmatpush1.bf16.msra.mxu0 %v1231
    %1251 = vmatprep.subr.bf16.mxu0 0
    %1252 = vmatpush1.bf16.msra.mxu0 %v1232
    %1253 = vmatprep.subr.bf16.mxu0 0
    %1254 = vmatpush1.bf16.msra.mxu0 %v1233
    %1255 = vmatprep.subr.bf16.mxu0 0
    %1256 = vmatpush1.bf16.msra.mxu0 %v1234
    %1257 = vmatprep.subr.bf16.mxu0 0
    %1258 = vmatpush1.bf16.msra.mxu0 %v1235
    %1259 = vmatprep.subr.bf16.mxu0 0
    %1260 = vmatpush1.bf16.msra.mxu0 %v1236
    %1261 = vmatprep.subr.bf16.mxu0 0
    %1262 = vmatpush1.bf16.msra.mxu0 0
    %1263 = vmatprep.subr.bf16.mxu0 0
    %1264 = vmatpush1.bf16.msra.mxu0 0
    %1265 = vmatprep.subr.bf16.mxu0 0
    %1266 = vmatpush1.bf16.msra.mxu0 0
    %1267 = vmatprep.subr.bf16.mxu0 0
    %1268 = vmatpush1.bf16.msra.mxu0 0
    %1269 = vmatprep.subr.bf16.mxu0 0
    %1270 = vmatpush1.bf16.msra.mxu0 0
    %1271 = vmatprep.subr.bf16.mxu0 0
    %1272 = vmatpush1.bf16.msra.mxu0 0
    %1273 = vmatprep.subr.bf16.mxu0 0
    %1274 = vmatpush1.bf16.msra.mxu0 0
    %1275 = vmatprep.subr.bf16.mxu0 0
    %1276 = vmatpush1.bf16.msra.mxu0 0
    %1277 = vmatprep.mubr.bf16.mxu0 0
    %1278 = vmatmul.mubr.bf16.gmra.mrb[0].mxu0 %v1196
    %v1279 = vpop.f32.mrb[0].mxu0
    %v1280 = vadd.f32 0.0, %v1279
    %v1281 = vpop.f32.mrb[0].mxu0
    %v1282 = vpop.f32.mrb[0].mxu0
    %v1283 = vpop.f32.mrb[0].mxu0
    %1284 = vdwg.mxu0
    %v1301 = vunpack.c.l.b16 %v203
    %v1302 = vunpack.c.l.b16 %v204
    %v1303 = vunpack.c.l.b16 %v205
    %v1304 = vunpack.c.l.b16 %v206
    %v1305 = vunpack.c.l.b16 %v207
    %v1306 = vunpack.c.l.b16 %v208
    %v1307 = vunpack.c.l.b16 %v209
    %v1308 = vunpack.c.l.b16 %v210
    %v1309 = vunpack.c.l.b16 %v211
    %v1310 = vunpack.c.l.b16 %v212
    %v1311 = vunpack.c.l.b16 %v213
    %v1312 = vunpack.c.l.b16 %v214
    %v1313 = vunpack.c.l.b16 %v215
    %v1314 = vunpack.c.l.b16 %v216
    %v1315 = vunpack.c.l.b16 %v217
    %v1316 = vunpack.c.l.b16 %v218
    %v1317 = vpack.c.b16 %v1302, %v1301
    %v1318 = vpack.c.b16 %v1304, %v1303
    %v1319 = vpack.c.b16 %v1306, %v1305
    %v1320 = vpack.c.b16 %v1308, %v1307
    %v1321 = vpack.c.b16 %v1310, %v1309
    %v1322 = vpack.c.b16 %v1312, %v1311
    %v1323 = vpack.c.b16 %v1314, %v1313
    %v1324 = vpack.c.b16 %v1316, %v1315
    %1333 = vmatprep.subr.bf16.mxu0 0
    %1334 = vmatpush1.bf16.msra.mxu0 %v1317
    %1335 = vmatprep.subr.bf16.mxu0 0
    %1336 = vmatpush1.bf16.msra.mxu0 %v1318
    %1337 = vmatprep.subr.bf16.mxu0 0
    %1338 = vmatpush1.bf16.msra.mxu0 %v1319
    %1339 = vmatprep.subr.bf16.mxu0 0
    %1340 = vmatpush1.bf16.msra.mxu0 %v1320
    %1341 = vmatprep.subr.bf16.mxu0 0
    %1342 = vmatpush1.bf16.msra.mxu0 %v1321
    %1343 = vmatprep.subr.bf16.mxu0 0
    %1344 = vmatpush1.bf16.msra.mxu0 %v1322
    %1345 = vmatprep.subr.bf16.mxu0 0
    %1346 = vmatpush1.bf16.msra.mxu0 %v1323
    %1347 = vmatprep.subr.bf16.mxu0 0
    %1348 = vmatpush1.bf16.msra.mxu0 %v1324
    %1349 = vmatprep.subr.bf16.mxu0 0
    %1350 = vmatpush1.bf16.msra.mxu0 0
    %1351 = vmatprep.subr.bf16.mxu0 0
    %1352 = vmatpush1.bf16.msra.mxu0 0
    %1353 = vmatprep.subr.bf16.mxu0 0
    %1354 = vmatpush1.bf16.msra.mxu0 0
    %1355 = vmatprep.subr.bf16.mxu0 0
    %1356 = vmatpush1.bf16.msra.mxu0 0
    %1357 = vmatprep.subr.bf16.mxu0 0
    %1358 = vmatpush1.bf16.msra.mxu0 0
    %1359 = vmatprep.subr.bf16.mxu0 0
    %1360 = vmatpush1.bf16.msra.mxu0 0
    %1361 = vmatprep.subr.bf16.mxu0 0
    %1362 = vmatpush1.bf16.msra.mxu0 0
    %1363 = vmatprep.subr.bf16.mxu0 0
    %1364 = vmatpush1.bf16.msra.mxu0 0
    %1365 = vmatprep.mubr.bf16.mxu0 0
    %1366 = vmatmul.mubr.bf16.gmra.mrb[0].mxu0 %v1195
    %v1367 = vpop.f32.mrb[0].mxu0
    %v1368 = vadd.f32 %v1280, %v1367
    %v1369 = vpop.f32.mrb[0].mxu0
    %v1370 = vpop.f32.mrb[0].mxu0
    %v1371 = vpop.f32.mrb[0].mxu0
    %1372 = vdwg.mxu0
    %v1373 = vlaneseq
    %v1374 = vshrl.u32 %v1373, 7
    %v1375 = vsub.s32 0, %v1374
    %v1376 = vrot.slane %v259, %v1375
    %v1377 = vadd.f32 %v1368, %v1376
    %v1378 = vmax.f32 %v1377, 0.0
    %v1379 = vpack.c.bf16 %v1378, %v1378
    %v1380 = vlaneseq
    %v1381 = vshrl.u32 %v1380, 7
    %v1382 = vsub.s32 0, %v1381
    %v1383 = vrot.slane %v260, %v1382
    %v1400 = vunpack.c.l.b16 %v235
    %v1401 = vunpack.c.l.b16 %v236
    %v1402 = vunpack.c.l.b16 %v237
    %v1403 = vunpack.c.l.b16 %v238
    %v1404 = vunpack.c.l.b16 %v239
    %v1405 = vunpack.c.l.b16 %v240
    %v1406 = vunpack.c.l.b16 %v241
    %v1407 = vunpack.c.l.b16 %v242
    %v1408 = vunpack.c.l.b16 %v243
    %v1409 = vunpack.c.l.b16 %v244
    %v1410 = vunpack.c.l.b16 %v245
    %v1411 = vunpack.c.l.b16 %v246
    %v1412 = vunpack.c.l.b16 %v247
    %v1413 = vunpack.c.l.b16 %v248
    %v1414 = vunpack.c.l.b16 %v249
    %v1415 = vunpack.c.l.b16 %v250
    %v1416 = vpack.c.b16 %v1401, %v1400
    %v1417 = vpack.c.b16 %v1403, %v1402
    %v1418 = vpack.c.b16 %v1405, %v1404
    %v1419 = vpack.c.b16 %v1407, %v1406
    %v1420 = vpack.c.b16 %v1409, %v1408
    %v1421 = vpack.c.b16 %v1411, %v1410
    %v1422 = vpack.c.b16 %v1413, %v1412
    %v1423 = vpack.c.b16 %v1415, %v1414
    %1432 = vmatprep.subr.bf16.mxu0 0
    %1433 = vmatpush1.bf16.msra.mxu0 %v1416
    %1434 = vmatprep.subr.bf16.mxu0 0
    %1435 = vmatpush1.bf16.msra.mxu0 %v1417
    %1436 = vmatprep.subr.bf16.mxu0 0
    %1437 = vmatpush1.bf16.msra.mxu0 %v1418
    %1438 = vmatprep.subr.bf16.mxu0 0
    %1439 = vmatpush1.bf16.msra.mxu0 %v1419
    %1440 = vmatprep.subr.bf16.mxu0 0
    %1441 = vmatpush1.bf16.msra.mxu0 %v1420
    %1442 = vmatprep.subr.bf16.mxu0 0
    %1443 = vmatpush1.bf16.msra.mxu0 %v1421
    %1444 = vmatprep.subr.bf16.mxu0 0
    %1445 = vmatpush1.bf16.msra.mxu0 %v1422
    %1446 = vmatprep.subr.bf16.mxu0 0
    %1447 = vmatpush1.bf16.msra.mxu0 %v1423
    %1448 = vmatprep.subr.bf16.mxu0 0
    %1449 = vmatpush1.bf16.msra.mxu0 0
    %1450 = vmatprep.subr.bf16.mxu0 0
    %1451 = vmatpush1.bf16.msra.mxu0 0
    %1452 = vmatprep.subr.bf16.mxu0 0
    %1453 = vmatpush1.bf16.msra.mxu0 0
    %1454 = vmatprep.subr.bf16.mxu0 0
    %1455 = vmatpush1.bf16.msra.mxu0 0
    %1456 = vmatprep.subr.bf16.mxu0 0
    %1457 = vmatpush1.bf16.msra.mxu0 0
    %1458 = vmatprep.subr.bf16.mxu0 0
    %1459 = vmatpush1.bf16.msra.mxu0 0
    %1460 = vmatprep.subr.bf16.mxu0 0
    %1461 = vmatpush1.bf16.msra.mxu0 0
    %1462 = vmatprep.subr.bf16.mxu0 0
    %1463 = vmatpush1.bf16.msra.mxu0 0
    %1464 = vmatprep.mubr.bf16.mxu0 0
    %1465 = vmatmul.mubr.bf16.gmra.mrb[0].mxu0 %v1379
    %v1466 = vpop.f32.mrb[0].mxu0
    %v1467 = vadd.f32 %v1383, %v1466
    %v1468 = vpop.f32.mrb[0].mxu0
    %v1469 = vpop.f32.mrb[0].mxu0
    %v1470 = vpop.f32.mrb[0].mxu0
    %1471 = vdwg.mxu0
    %1472 = vst [vmem:[#allocation10] sm:$0xff] %v1467
    // Predicated region
    $region38: #{tpu_custom_call.1} parent=1 // pred_check
      _
    $region39: #{tpu_custom_call.1} parent=1 // pred_check_branch
      %1474 = sbr.rel (0) target = $region41
    $region40: #{tpu_custom_call.1} parent=1 // pred_region
      %s1476 = ssub.s32 128, 128
      %1477 = vsyncadd [#allocation4], %s1476
      %s1479 = sshll.u32 [#allocation10], 4
      %s1480 = int_to_ptr.vmem [resolvable:$true] %s1479
      %1482 = dma.vmem_to_hbm [thread:$0]  %s1480, 128, %s5, [#allocation4]
    $region41: #{tpu_custom_call.1} parent=1 // pred_fallthru
      _
    // Predicated region
    $region42: #{tpu_custom_call.1} parent=1 // pred_check
      _
    $region43: #{tpu_custom_call.1} parent=1 // pred_check_branch
      %1484 = sbr.rel (0) target = $region45
    $region44: #{tpu_custom_call.1} parent=1 // pred_region
      %1485 = dma.done [#allocation4], 128
    $region45: #{tpu_custom_call.1} parent=1 // pred_fallthru
      _
    %1486 = vsyncpa [#allocation3], 1
    %1487 = vsyncpa [#allocation6], 1
    %1488 = vsyncpa [#allocation9], 1
    %1489 = vsyncpa [#allocation4], 1

</llo_original>
